<compile_context>
chip_gen: v6e
topology: v6e:2x2x1
jax: 0.10.0
libtpu: 0.0.40
codegen_flags: <defaults>
</compile_context>

<pallas_src>
import functools
import math

import jax
import jax.numpy as jnp
from jax.experimental import pallas as pl
from jax.experimental.pallas import tpu as pltpu

LN_EPS = 1e-5  # PyTorch LayerNorm default


def _layer_norm(x, gamma, beta):
    """Single-pass LayerNorm over the last axis (f32 math).

    NOTE: E[x^2]-mean^2 can lose precision for large-mean activations; use the
    two-pass form if strict parity with PyTorch is required."""
    mu = jnp.mean(x, axis=-1, keepdims=True)
    m2 = jnp.mean(x * x, axis=-1, keepdims=True)
    var = m2 - mu * mu
    return (x - mu) * jax.lax.rsqrt(var + LN_EPS) * gamma + beta


def encoder_block_kernel(n_head, bf16_exp,
                         q_ref, k_ref, v_ref, mask_ref,
                         wq_ref, wk_ref, wv_ref, wo_ref, bo_ref,
                         g1_ref, b1_ref, g2_ref, b2_ref,
                         out_ref):
    BT, S, Din = q_ref.shape
    Dout = wo_ref.shape[0]
    hd = Dout // n_head
    neg_inf = jnp.float32(-1e30)

    g1 = g1_ref[...]                    # (1, Din) f32
    b1 = b1_ref[...]
    g2 = g2_ref[...]                    # (1, Dout) f32
    b2 = b2_ref[...]
    bo = bo_ref[...]                    # (1, Dout) f32
    wo = wo_ref[...]                    # (Dout, Dout) bf16

    # Fused (BT*S, Din) slabs for norm1 + the three projections (pure
    # major-dim merge of the (BT, S, Din) block -- layout free).
    xq = q_ref[...].reshape(BT * S, Din)
    xk = k_ref[...].reshape(BT * S, Din)
    xv = v_ref[...].reshape(BT * S, Din)

    # Pre-norm on query / key / value inputs (norm1, shared params), f32.
    qn = _layer_norm(xq, g1, b1)
    kn = _layer_norm(xk, g1, b1)
    vn = _layer_norm(xv, g1, b1)

    # Bias-free projections: bf16 operands, f32 accumulation on the MXU.
    # The 1/sqrt(head_dim) attention scale is pre-folded into Wq on the host.
    Q = jnp.dot(qn.astype(jnp.bfloat16), wq_ref[...],
                preferred_element_type=jnp.float32)       # (BT*S, Dout)
    K = jnp.dot(kn.astype(jnp.bfloat16), wk_ref[...],
                preferred_element_type=jnp.float32)
    V = jnp.dot(vn.astype(jnp.bfloat16), wv_ref[...],
                preferred_element_type=jnp.float32)

    # Cast once for the MXU, split back to (BT, S, Dout) (major-dim split).
    Qb16 = Q.astype(jnp.bfloat16).reshape(BT, S, Dout)
    Kb16 = K.astype(jnp.bfloat16).reshape(BT, S, Dout)
    Vb16 = V.astype(jnp.bfloat16).reshape(BT, S, Dout)

    # dot_general dimension numbers for Qh @ Kh^T without materializing K^T.
    dn_qkT = (((1,), (1,)), ((), ()))

    for b in range(BT):                                   # static batch-in-block loop
        # Key-padding mask as a (1, S) additive bias, computed once per element.
        bias = jnp.where(mask_ref[b] > 0, jnp.float32(0.0), neg_inf)   # (1, S)

        Qb = Qb16[b]                                       # (S, Dout) bf16
        Kb = Kb16[b]
        Vb = Vb16[b]

        # Per-head attention.  Head contexts are concatenated and pushed
        # through ONE (S, Dout) @ (Dout, Dout) output projection (full MXU
        # contraction depth) instead of n_head tiny-K matmuls + f32 adds.
        ctx_heads = []
        for h in range(n_head):                            # static head loop
            lo = h * hd
            Qh = Qb[:, lo:lo + hd]
            Kh = Kb[:, lo:lo + hd]
            Vh = Vb[:, lo:lo + hd]

            scores = jax.lax.dot_general(
                Qh, Kh, dn_qkT, preferred_element_type=jnp.float32) + bias
            m = jnp.max(scores, axis=-1, keepdims=True)    # f32
            if bf16_exp:
                # bf16-capable EUP (v6e / v7x): exp in bf16, row sums in f32.
                p = jnp.exp((scores - m).astype(jnp.bfloat16))          # (S,S) bf16
                denom = jnp.sum(p, axis=-1, keepdims=True, dtype=jnp.float32)
            else:
                # v5e and older: f32 EUP only.
                pf = jnp.exp(scores - m)
                denom = jnp.sum(pf, axis=-1, keepdims=True)
                p = pf.astype(jnp.bfloat16)

            ctx = jnp.dot(p, Vh, preferred_element_type=jnp.float32)    # (S, hd)
            # Normalize the (S, hd) context instead of the (S, S) probs.
            ctx_heads.append(ctx * pl.reciprocal(denom, approx=True))

        ctx_all = jnp.concatenate(ctx_heads, axis=-1)      # (S, Dout) f32
        proj = jnp.dot(ctx_all.astype(jnp.bfloat16), wo,
                       preferred_element_type=jnp.float32)              # (S, Dout)

        # out_proj bias, residual with the raw query (indexed from the ref,
        # not the flattened slab), post-norm (f32).
        res = proj + bo + q_ref[b]                         # requires Din == Dout
        out_ref[b] = _layer_norm(res, g2, b2).astype(out_ref.dtype)


def _block_vmem_bytes(bt, S, Din, Dout, n_head):
    """Generous per-grid-step VMEM estimate: pipelined I/O blocks + weights
    (x2 buffers each) plus live in-kernel intermediates."""
    f32, bf16 = 4, 2
    io_blocks = (3 * bt * S * Din + bt * S + bt * S * Dout) * f32   # q/k/v, mask, out
    weights = (3 * Din * Dout + Dout * Dout) * bf16 + (2 * Din + 3 * Dout) * f32
    pipelined = 2 * (io_blocks + weights)                  # double-buffered
    live = (3 * bt * S * Din * f32                         # normalized q/k/v slabs
            + 3 * bt * S * Dout * (f32 + bf16)             # Q/K/V f32 + bf16 copies
            + S * S * (f32 + bf16)                         # one head's scores + probs
            + 2 * S * Dout * f32)                          # ctx concat / proj / residual
    return pipelined + live


def encoder_block(x, params, n_head, batch_tile=None):
    """x: dict with 'query','key','value' [B,S,Din], 'full_mask','person_mask'
    [B,1,H,W] with H*W == S."""
    q, k, v = x['query'], x['key'], x['value']
    full_mask = x['full_mask']
    _ = x['person_mask']  # TODO(synk): unused, forward body truncated in reference.

    B, S, Din = q.shape
    Dout = params['wq'].shape[1]
    assert Din == Dout, "residual connection requires in_dim == out_dim"
    assert Dout % n_head == 0, "out_dim must be divisible by n_head"
    hd = Dout // n_head

    # Flatten NCHW mask -> [B, 1, S] key-padding mask.
    mask_flat = full_mask.reshape(B, 1, -1).astype(jnp.float32)
    assert mask_flat.shape[-1] == S

    # Generation-aware knobs: bf16 exp only where the EUP supports it, and a
    # smaller VMEM working-set target on v7x (64 MiB physical VMEM).
    try:
        kind = jax.devices()[0].device_kind.lower()
    except Exception:
        kind = ""
    is_v7 = "v7" in kind
    bf16_exp = ("v6" in kind) or is_v7          # f32 exp on v5e and older
    vmem_target = (40 if is_v7 else 96) * (1 << 20)

    # Batch fusion: largest divisor of B whose estimated footprint fits the
    # target, while keeping >= 2 grid steps so both v7x TensorCores get work.
    if batch_tile is None:
        bt = 1
        for cand in range(1, B + 1):
            if B % cand:
                continue
            if B >= 2 and B // cand < 2:
                continue
            if _block_vmem_bytes(cand, S, Din, Dout, n_head) <= vmem_target:
                bt = cand
        batch_tile = bt
    assert B % batch_tile == 0
    BT = batch_tile

    needed = _block_vmem_bytes(BT, S, Din, Dout, n_head)
    vmem_limit = int(min(vmem_target, max(needed * 5 // 4, 16 << 20)))

    # bf16 weights for the MXU (accumulation stays f32); fold the 1/sqrt(hd)
    # attention scale into Wq; norm/bias params stay f32.
    scale = 1.0 / math.sqrt(hd)
    wq = (params['wq'] * scale).astype(jnp.bfloat16)
    wk = params['wk'].astype(jnp.bfloat16)
    wv = params['wv'].astype(jnp.bfloat16)
    wo = params['wo'].astype(jnp.bfloat16)

    kernel = functools.partial(encoder_block_kernel, n_head, bf16_exp)
    const2 = lambda i: (0, 0)
    per_bt = lambda i: (i, 0, 0)

    return pl.pallas_call(
        kernel,
        out_shape=jax.ShapeDtypeStruct((B, S, Dout), jnp.float32),
        grid=(B // BT,),
        in_specs=[
            pl.BlockSpec((BT, S, Din), per_bt),      # query
            pl.BlockSpec((BT, S, Din), per_bt),      # key
            pl.BlockSpec((BT, S, Din), per_bt),      # value
            pl.BlockSpec((BT, 1, S), per_bt),        # full_mask (flattened)
            pl.BlockSpec((Din, Dout), const2),       # Wq (bf16, pre-scaled)
            pl.BlockSpec((Din, Dout), const2),       # Wk (bf16)
            pl.BlockSpec((Din, Dout), const2),       # Wv (bf16)
            pl.BlockSpec((Dout, Dout), const2),      # Wo (bf16)
            pl.BlockSpec((1, Dout), const2),         # bo
            pl.BlockSpec((1, Din), const2),          # norm1 gamma
            pl.BlockSpec((1, Din), const2),          # norm1 beta
            pl.BlockSpec((1, Dout), const2),         # norm2 gamma
            pl.BlockSpec((1, Dout), const2),         # norm2 beta
        ],
        out_specs=pl.BlockSpec((BT, S, Dout), per_bt),
        compiler_params=pltpu.CompilerParams(
            dimension_semantics=("parallel",),
            vmem_limit_bytes=vmem_limit),
    )(q, k, v, mask_flat,
      wq, wk, wv, wo, params['bo'],
      params['g1'], params['b1'], params['g2'], params['b2'])


def make_params(key, in_dim, out_dim):
    """Deterministic synthetic parameters (PyTorch-style uniform init)."""
    ks = jax.random.split(key, 5)
    lim_in = 1.0 / (in_dim ** 0.5)
    lim_out = 1.0 / (out_dim ** 0.5)
    u = lambda k, shape, lim: jax.random.uniform(
        k, shape, jnp.float32, minval=-lim, maxval=lim)
    return {
        'wq': u(ks[0], (in_dim, out_dim), lim_in),
        'wk': u(ks[1], (in_dim, out_dim), lim_in),
        'wv': u(ks[2], (in_dim, out_dim), lim_in),
        'wo': u(ks[3], (out_dim, out_dim), lim_out),
        'bo': u(ks[4], (1, out_dim), lim_out),
        'g1': jnp.ones((1, in_dim), jnp.float32),
        'b1': jnp.zeros((1, in_dim), jnp.float32),
        'g2': jnp.ones((1, out_dim), jnp.float32),
        'b2': jnp.zeros((1, out_dim), jnp.float32),
    }


if __name__ == "__main__":
    # Small shapes consistent with the module:
    #   batch=2, in_channel=4, patch grid 4x4 -> seq=16, in_dim=out_dim=32, n_head=4
    B, H, W = 2, 4, 4
    S = H * W
    IN_DIM = OUT_DIM = 32
    N_HEAD = 4

    key = jax.random.PRNGKey(0)
    k_q, k_k, k_v, k_m, k_p, k_w = jax.random.split(key, 6)

    q = jax.random.normal(k_q, (B, S, IN_DIM), jnp.float32)
    k = jax.random.normal(k_k, (B, S, IN_DIM), jnp.float32)
    v = jax.random.normal(k_v, (B, S, IN_DIM), jnp.float32)

    full_mask = jax.random.bernoulli(k_m, 0.7, (B, 1, H, W)).astype(jnp.float32)
    # guarantee at least one valid key per batch element
    full_mask = full_mask.at[:, :, 0, 0].set(1.0)
    person_mask = jax.random.bernoulli(k_p, 0.5, (B, 1, H, W)).astype(jnp.float32)

    params = make_params(k_w, IN_DIM, OUT_DIM)

    x = {'query': q, 'key': k, 'value': v,
         'full_mask': full_mask, 'person_mask': person_mask}

    out = encoder_block(x, params, N_HEAD)
    out = jax.block_until_ready(out)
    assert out.shape == (B, S, OUT_DIM)
    assert bool(jnp.all(jnp.isfinite(out)))
    print("KERNEL_OK")
</pallas_src>

<mosaic_0001>
module attributes {stable_mosaic.version = 11 : i64} {
  func.func @encoder_block_kernel(%arg0: i32, %arg1: memref<1x16x32xf32, #tpu.memory_space<vmem>>, %arg2: memref<1x16x32xf32, #tpu.memory_space<vmem>>, %arg3: memref<1x16x32xf32, #tpu.memory_space<vmem>>, %arg4: memref<1x1x16xf32, #tpu.memory_space<vmem>>, %arg5: memref<32x32xbf16, #tpu.memory_space<vmem>>, %arg6: memref<32x32xbf16, #tpu.memory_space<vmem>>, %arg7: memref<32x32xbf16, #tpu.memory_space<vmem>>, %arg8: memref<32x32xbf16, #tpu.memory_space<vmem>>, %arg9: memref<1x32xf32, #tpu.memory_space<vmem>>, %arg10: memref<1x32xf32, #tpu.memory_space<vmem>>, %arg11: memref<1x32xf32, #tpu.memory_space<vmem>>, %arg12: memref<1x32xf32, #tpu.memory_space<vmem>>, %arg13: memref<1x32xf32, #tpu.memory_space<vmem>>, %arg14: memref<1x16x32xf32, #tpu.memory_space<vmem>>) attributes {dimension_semantics = [#tpu.dimension_semantics<parallel>], iteration_bounds = array<i64: 2>, scalar_prefetch = 0 : i64, scratch_operands = 0 : i64, tpu.core_type = #tpu.core_type<tc>, window_params = [{transform_indices = @transform_0, window_bounds = array<i64: 1, 16, 32>}, {transform_indices = @transform_1, window_bounds = array<i64: 1, 16, 32>}, {transform_indices = @transform_2, window_bounds = array<i64: 1, 16, 32>}, {transform_indices = @transform_3, window_bounds = array<i64: 1, 1, 16>}, {pipeline_mode = #tpu.pipeline_mode<synchronous>, transform_indices = @transform_4, window_bounds = array<i64: 32, 32>}, {pipeline_mode = #tpu.pipeline_mode<synchronous>, transform_indices = @transform_5, window_bounds = array<i64: 32, 32>}, {pipeline_mode = #tpu.pipeline_mode<synchronous>, transform_indices = @transform_6, window_bounds = array<i64: 32, 32>}, {pipeline_mode = #tpu.pipeline_mode<synchronous>, transform_indices = @transform_7, window_bounds = array<i64: 32, 32>}, {pipeline_mode = #tpu.pipeline_mode<synchronous>, transform_indices = @transform_8, window_bounds = array<i64: 1, 32>}, {pipeline_mode = #tpu.pipeline_mode<synchronous>, transform_indices = @transform_9, window_bounds = array<i64: 1, 32>}, {pipeline_mode = #tpu.pipeline_mode<synchronous>, transform_indices = @transform_10, window_bounds = array<i64: 1, 32>}, {pipeline_mode = #tpu.pipeline_mode<synchronous>, transform_indices = @transform_11, window_bounds = array<i64: 1, 32>}, {pipeline_mode = #tpu.pipeline_mode<synchronous>, transform_indices = @transform_12, window_bounds = array<i64: 1, 32>}, {transform_indices = @transform_13, window_bounds = array<i64: 1, 16, 32>}]} {
    %c0 = arith.constant 0 : index
    %c0_0 = arith.constant 0 : index
    %0 = vector.load %arg10[%c0, %c0_0] : memref<1x32xf32, #tpu.memory_space<vmem>>, vector<1x32xf32>
    %c0_1 = arith.constant 0 : index
    %c0_2 = arith.constant 0 : index
    %1 = vector.load %arg11[%c0_1, %c0_2] : memref<1x32xf32, #tpu.memory_space<vmem>>, vector<1x32xf32>
    %c0_3 = arith.constant 0 : index
    %c0_4 = arith.constant 0 : index
    %2 = vector.load %arg12[%c0_3, %c0_4] : memref<1x32xf32, #tpu.memory_space<vmem>>, vector<1x32xf32>
    %c0_5 = arith.constant 0 : index
    %c0_6 = arith.constant 0 : index
    %3 = vector.load %arg13[%c0_5, %c0_6] : memref<1x32xf32, #tpu.memory_space<vmem>>, vector<1x32xf32>
    %c0_7 = arith.constant 0 : index
    %c0_8 = arith.constant 0 : index
    %4 = vector.load %arg9[%c0_7, %c0_8] : memref<1x32xf32, #tpu.memory_space<vmem>>, vector<1x32xf32>
    %c0_9 = arith.constant 0 : index
    %c0_10 = arith.constant 0 : index
    %5 = vector.load %arg8[%c0_9, %c0_10] : memref<32x32xbf16, #tpu.memory_space<vmem>>, vector<32x32xbf16>
    %c0_11 = arith.constant 0 : index
    %c0_12 = arith.constant 0 : index
    %c0_13 = arith.constant 0 : index
    %6 = vector.load %arg1[%c0_11, %c0_12, %c0_13] : memref<1x16x32xf32, #tpu.memory_space<vmem>>, vector<1x16x32xf32>
    %7 = vector.shape_cast %6 : vector<1x16x32xf32> to vector<16x32xf32>
    %c0_14 = arith.constant 0 : index
    %c0_15 = arith.constant 0 : index
    %c0_16 = arith.constant 0 : index
    %8 = vector.load %arg2[%c0_14, %c0_15, %c0_16] : memref<1x16x32xf32, #tpu.memory_space<vmem>>, vector<1x16x32xf32>
    %9 = vector.shape_cast %8 : vector<1x16x32xf32> to vector<16x32xf32>
    %c0_17 = arith.constant 0 : index
    %c0_18 = arith.constant 0 : index
    %c0_19 = arith.constant 0 : index
    %10 = vector.load %arg3[%c0_17, %c0_18, %c0_19] : memref<1x16x32xf32, #tpu.memory_space<vmem>>, vector<1x16x32xf32>
    %11 = vector.shape_cast %10 : vector<1x16x32xf32> to vector<16x32xf32>
    %cst = arith.constant dense<0.000000e+00> : vector<16xf32>
    %12 = vector.multi_reduction <add>, %7, %cst [1] : vector<16x32xf32> to vector<16xf32>
    %13 = vector.shape_cast %12 : vector<16xf32> to vector<16x1xf32>
    %cst_20 = arith.constant 3.200000e+01 : f32
    %14 = vector.broadcast %cst_20 : f32 to vector<16x1xf32>
    %15 = arith.divf %13, %14 : vector<16x1xf32>
    %16 = arith.mulf %7, %7 : vector<16x32xf32>
    %cst_21 = arith.constant dense<0.000000e+00> : vector<16xf32>
    %17 = vector.multi_reduction <add>, %16, %cst_21 [1] : vector<16x32xf32> to vector<16xf32>
    %18 = vector.shape_cast %17 : vector<16xf32> to vector<16x1xf32>
    %cst_22 = arith.constant 3.200000e+01 : f32
    %19 = vector.broadcast %cst_22 : f32 to vector<16x1xf32>
    %20 = arith.divf %18, %19 : vector<16x1xf32>
    %21 = arith.mulf %15, %15 : vector<16x1xf32>
    %22 = arith.subf %20, %21 : vector<16x1xf32>
    %23 = vector.broadcast %15 : vector<16x1xf32> to vector<16x32xf32>
    %24 = arith.subf %7, %23 : vector<16x32xf32>
    %cst_23 = arith.constant 9.99999974E-6 : f32
    %25 = vector.broadcast %cst_23 : f32 to vector<16x1xf32>
    %26 = arith.addf %22, %25 : vector<16x1xf32>
    %27 = math.rsqrt %26 : vector<16x1xf32>
    %28 = vector.broadcast %27 : vector<16x1xf32> to vector<16x32xf32>
    %29 = arith.mulf %24, %28 : vector<16x32xf32>
    %30 = vector.broadcast %0 : vector<1x32xf32> to vector<16x32xf32>
    %31 = arith.mulf %29, %30 : vector<16x32xf32>
    %32 = vector.broadcast %1 : vector<1x32xf32> to vector<16x32xf32>
    %33 = arith.addf %31, %32 : vector<16x32xf32>
    %cst_24 = arith.constant dense<0.000000e+00> : vector<16xf32>
    %34 = vector.multi_reduction <add>, %9, %cst_24 [1] : vector<16x32xf32> to vector<16xf32>
    %35 = vector.shape_cast %34 : vector<16xf32> to vector<16x1xf32>
    %cst_25 = arith.constant 3.200000e+01 : f32
    %36 = vector.broadcast %cst_25 : f32 to vector<16x1xf32>
    %37 = arith.divf %35, %36 : vector<16x1xf32>
    %38 = arith.mulf %9, %9 : vector<16x32xf32>
    %cst_26 = arith.constant dense<0.000000e+00> : vector<16xf32>
    %39 = vector.multi_reduction <add>, %38, %cst_26 [1] : vector<16x32xf32> to vector<16xf32>
    %40 = vector.shape_cast %39 : vector<16xf32> to vector<16x1xf32>
    %cst_27 = arith.constant 3.200000e+01 : f32
    %41 = vector.broadcast %cst_27 : f32 to vector<16x1xf32>
    %42 = arith.divf %40, %41 : vector<16x1xf32>
    %43 = arith.mulf %37, %37 : vector<16x1xf32>
    %44 = arith.subf %42, %43 : vector<16x1xf32>
    %45 = vector.broadcast %37 : vector<16x1xf32> to vector<16x32xf32>
    %46 = arith.subf %9, %45 : vector<16x32xf32>
    %cst_28 = arith.constant 9.99999974E-6 : f32
    %47 = vector.broadcast %cst_28 : f32 to vector<16x1xf32>
    %48 = arith.addf %44, %47 : vector<16x1xf32>
    %49 = math.rsqrt %48 : vector<16x1xf32>
    %50 = vector.broadcast %49 : vector<16x1xf32> to vector<16x32xf32>
    %51 = arith.mulf %46, %50 : vector<16x32xf32>
    %52 = vector.broadcast %0 : vector<1x32xf32> to vector<16x32xf32>
    %53 = arith.mulf %51, %52 : vector<16x32xf32>
    %54 = vector.broadcast %1 : vector<1x32xf32> to vector<16x32xf32>
    %55 = arith.addf %53, %54 : vector<16x32xf32>
    %cst_29 = arith.constant dense<0.000000e+00> : vector<16xf32>
    %56 = vector.multi_reduction <add>, %11, %cst_29 [1] : vector<16x32xf32> to vector<16xf32>
    %57 = vector.shape_cast %56 : vector<16xf32> to vector<16x1xf32>
    %cst_30 = arith.constant 3.200000e+01 : f32
    %58 = vector.broadcast %cst_30 : f32 to vector<16x1xf32>
    %59 = arith.divf %57, %58 : vector<16x1xf32>
    %60 = arith.mulf %11, %11 : vector<16x32xf32>
    %cst_31 = arith.constant dense<0.000000e+00> : vector<16xf32>
    %61 = vector.multi_reduction <add>, %60, %cst_31 [1] : vector<16x32xf32> to vector<16xf32>
    %62 = vector.shape_cast %61 : vector<16xf32> to vector<16x1xf32>
    %cst_32 = arith.constant 3.200000e+01 : f32
    %63 = vector.broadcast %cst_32 : f32 to vector<16x1xf32>
    %64 = arith.divf %62, %63 : vector<16x1xf32>
    %65 = arith.mulf %59, %59 : vector<16x1xf32>
    %66 = arith.subf %64, %65 : vector<16x1xf32>
    %67 = vector.broadcast %59 : vector<16x1xf32> to vector<16x32xf32>
    %68 = arith.subf %11, %67 : vector<16x32xf32>
    %cst_33 = arith.constant 9.99999974E-6 : f32
    %69 = vector.broadcast %cst_33 : f32 to vector<16x1xf32>
    %70 = arith.addf %66, %69 : vector<16x1xf32>
    %71 = math.rsqrt %70 : vector<16x1xf32>
    %72 = vector.broadcast %71 : vector<16x1xf32> to vector<16x32xf32>
    %73 = arith.mulf %68, %72 : vector<16x32xf32>
    %74 = vector.broadcast %0 : vector<1x32xf32> to vector<16x32xf32>
    %75 = arith.mulf %73, %74 : vector<16x32xf32>
    %76 = vector.broadcast %1 : vector<1x32xf32> to vector<16x32xf32>
    %77 = arith.addf %75, %76 : vector<16x32xf32>
    %78 = arith.truncf %33 : vector<16x32xf32> to vector<16x32xbf16>
    %c0_34 = arith.constant 0 : index
    %c0_35 = arith.constant 0 : index
    %79 = vector.load %arg5[%c0_34, %c0_35] : memref<32x32xbf16, #tpu.memory_space<vmem>>, vector<32x32xbf16>
    %cst_36 = arith.constant dense<0.000000e+00> : vector<16x32xf32>
    %80 = tpu.matmul %78, %79, %cst_36 {dimension_numbers = #tpu.dot_dimension_numbers<[1], [0], [0], [1], [0, 0, 1, 1], [], []>} : vector<16x32xbf16>, vector<32x32xbf16>, vector<16x32xf32> -> vector<16x32xf32>
    %81 = arith.truncf %55 : vector<16x32xf32> to vector<16x32xbf16>
    %c0_37 = arith.constant 0 : index
    %c0_38 = arith.constant 0 : index
    %82 = vector.load %arg6[%c0_37, %c0_38] : memref<32x32xbf16, #tpu.memory_space<vmem>>, vector<32x32xbf16>
    %cst_39 = arith.constant dense<0.000000e+00> : vector<16x32xf32>
    %83 = tpu.matmul %81, %82, %cst_39 {dimension_numbers = #tpu.dot_dimension_numbers<[1], [0], [0], [1], [0, 0, 1, 1], [], []>} : vector<16x32xbf16>, vector<32x32xbf16>, vector<16x32xf32> -> vector<16x32xf32>
    %84 = arith.truncf %77 : vector<16x32xf32> to vector<16x32xbf16>
    %c0_40 = arith.constant 0 : index
    %c0_41 = arith.constant 0 : index
    %85 = vector.load %arg7[%c0_40, %c0_41] : memref<32x32xbf16, #tpu.memory_space<vmem>>, vector<32x32xbf16>
    %cst_42 = arith.constant dense<0.000000e+00> : vector<16x32xf32>
    %86 = tpu.matmul %84, %85, %cst_42 {dimension_numbers = #tpu.dot_dimension_numbers<[1], [0], [0], [1], [0, 0, 1, 1], [], []>} : vector<16x32xbf16>, vector<32x32xbf16>, vector<16x32xf32> -> vector<16x32xf32>
    %87 = arith.truncf %80 : vector<16x32xf32> to vector<16x32xbf16>
    %88 = vector.shape_cast %87 : vector<16x32xbf16> to vector<1x16x32xbf16>
    %89 = arith.truncf %83 : vector<16x32xf32> to vector<16x32xbf16>
    %90 = vector.shape_cast %89 : vector<16x32xbf16> to vector<1x16x32xbf16>
    %91 = arith.truncf %86 : vector<16x32xf32> to vector<16x32xbf16>
    %92 = vector.shape_cast %91 : vector<16x32xbf16> to vector<1x16x32xbf16>
    %c0_43 = arith.constant 0 : index
    %c0_44 = arith.constant 0 : index
    %c0_45 = arith.constant 0 : index
    %93 = vector.load %arg4[%c0_43, %c0_44, %c0_45] : memref<1x1x16xf32, #tpu.memory_space<vmem>>, vector<1x1x16xf32>
    %94 = vector.shape_cast %93 : vector<1x1x16xf32> to vector<1x16xf32>
    %cst_46 = arith.constant 0.000000e+00 : f32
    %95 = vector.broadcast %cst_46 : f32 to vector<1x16xf32>
    %96 = arith.cmpf ogt, %94, %95 : vector<1x16xf32>
    %cst_47 = arith.constant 0.000000e+00 : f32
    %cst_48 = arith.constant -1.000000e+30 : f32
    %97 = vector.broadcast %cst_47 : f32 to vector<1x16xf32>
    %98 = vector.broadcast %cst_48 : f32 to vector<1x16xf32>
    %99 = arith.select %96, %97, %98 : vector<1x16xi1>, vector<1x16xf32>
    %100 = vector.shape_cast %88 : vector<1x16x32xbf16> to vector<16x32xbf16>
    %101 = vector.shape_cast %90 : vector<1x16x32xbf16> to vector<16x32xbf16>
    %102 = vector.shape_cast %92 : vector<1x16x32xbf16> to vector<16x32xbf16>
    %103 = vector.extract_strided_slice %100 {offsets = [0, 0], sizes = [16, 8], strides = [1, 1]} : vector<16x32xbf16> to vector<16x8xbf16>
    %104 = vector.extract_strided_slice %101 {offsets = [0, 0], sizes = [16, 8], strides = [1, 1]} : vector<16x32xbf16> to vector<16x8xbf16>
    %105 = vector.extract_strided_slice %102 {offsets = [0, 0], sizes = [16, 8], strides = [1, 1]} : vector<16x32xbf16> to vector<16x8xbf16>
    %cst_49 = arith.constant dense<0.000000e+00> : vector<16x16xf32>
    %106 = tpu.matmul %103, %104, %cst_49 {dimension_numbers = #tpu.dot_dimension_numbers<[1], [1], [0], [0], [0, 0, 1, 0], [], []>} : vector<16x8xbf16>, vector<16x8xbf16>, vector<16x16xf32> -> vector<16x16xf32>
    %107 = vector.broadcast %99 : vector<1x16xf32> to vector<16x16xf32>
    %108 = arith.addf %106, %107 : vector<16x16xf32>
    %cst_50 = arith.constant dense<0xFF800000> : vector<16xf32>
    %109 = vector.multi_reduction <maximumf>, %108, %cst_50 [1] : vector<16x16xf32> to vector<16xf32>
    %110 = vector.shape_cast %109 : vector<16xf32> to vector<16x1xf32>
    %111 = vector.broadcast %110 : vector<16x1xf32> to vector<16x16xf32>
    %112 = arith.subf %108, %111 : vector<16x16xf32>
    %113 = math.exp %112 : vector<16x16xf32>
    %cst_51 = arith.constant dense<0.000000e+00> : vector<16xf32>
    %114 = vector.multi_reduction <add>, %113, %cst_51 [1] : vector<16x16xf32> to vector<16xf32>
    %115 = vector.shape_cast %114 : vector<16xf32> to vector<16x1xf32>
    %116 = arith.truncf %113 : vector<16x16xf32> to vector<16x16xbf16>
    %cst_52 = arith.constant dense<0.000000e+00> : vector<16x8xf32>
    %117 = tpu.matmul %116, %105, %cst_52 {dimension_numbers = #tpu.dot_dimension_numbers<[1], [0], [0], [1], [0, 0, 1, 1], [], []>} : vector<16x16xbf16>, vector<16x8xbf16>, vector<16x8xf32> -> vector<16x8xf32>
    %118 = tpu.reciprocal %115 {approx = true} : vector<16x1xf32> -> vector<16x1xf32>
    %119 = vector.broadcast %118 : vector<16x1xf32> to vector<16x8xf32>
    %120 = arith.mulf %117, %119 : vector<16x8xf32>
    %121 = vector.extract_strided_slice %100 {offsets = [0, 8], sizes = [16, 8], strides = [1, 1]} : vector<16x32xbf16> to vector<16x8xbf16>
    %122 = vector.extract_strided_slice %101 {offsets = [0, 8], sizes = [16, 8], strides = [1, 1]} : vector<16x32xbf16> to vector<16x8xbf16>
    %123 = vector.extract_strided_slice %102 {offsets = [0, 8], sizes = [16, 8], strides = [1, 1]} : vector<16x32xbf16> to vector<16x8xbf16>
    %cst_53 = arith.constant dense<0.000000e+00> : vector<16x16xf32>
    %124 = tpu.matmul %121, %122, %cst_53 {dimension_numbers = #tpu.dot_dimension_numbers<[1], [1], [0], [0], [0, 0, 1, 0], [], []>} : vector<16x8xbf16>, vector<16x8xbf16>, vector<16x16xf32> -> vector<16x16xf32>
    %125 = vector.broadcast %99 : vector<1x16xf32> to vector<16x16xf32>
    %126 = arith.addf %124, %125 : vector<16x16xf32>
    %cst_54 = arith.constant dense<0xFF800000> : vector<16xf32>
    %127 = vector.multi_reduction <maximumf>, %126, %cst_54 [1] : vector<16x16xf32> to vector<16xf32>
    %128 = vector.shape_cast %127 : vector<16xf32> to vector<16x1xf32>
    %129 = vector.broadcast %128 : vector<16x1xf32> to vector<16x16xf32>
    %130 = arith.subf %126, %129 : vector<16x16xf32>
    %131 = math.exp %130 : vector<16x16xf32>
    %cst_55 = arith.constant dense<0.000000e+00> : vector<16xf32>
    %132 = vector.multi_reduction <add>, %131, %cst_55 [1] : vector<16x16xf32> to vector<16xf32>
    %133 = vector.shape_cast %132 : vector<16xf32> to vector<16x1xf32>
    %134 = arith.truncf %131 : vector<16x16xf32> to vector<16x16xbf16>
    %cst_56 = arith.constant dense<0.000000e+00> : vector<16x8xf32>
    %135 = tpu.matmul %134, %123, %cst_56 {dimension_numbers = #tpu.dot_dimension_numbers<[1], [0], [0], [1], [0, 0, 1, 1], [], []>} : vector<16x16xbf16>, vector<16x8xbf16>, vector<16x8xf32> -> vector<16x8xf32>
    %136 = tpu.reciprocal %133 {approx = true} : vector<16x1xf32> -> vector<16x1xf32>
    %137 = vector.broadcast %136 : vector<16x1xf32> to vector<16x8xf32>
    %138 = arith.mulf %135, %137 : vector<16x8xf32>
    %139 = vector.extract_strided_slice %100 {offsets = [0, 16], sizes = [16, 8], strides = [1, 1]} : vector<16x32xbf16> to vector<16x8xbf16>
    %140 = vector.extract_strided_slice %101 {offsets = [0, 16], sizes = [16, 8], strides = [1, 1]} : vector<16x32xbf16> to vector<16x8xbf16>
    %141 = vector.extract_strided_slice %102 {offsets = [0, 16], sizes = [16, 8], strides = [1, 1]} : vector<16x32xbf16> to vector<16x8xbf16>
    %cst_57 = arith.constant dense<0.000000e+00> : vector<16x16xf32>
    %142 = tpu.matmul %139, %140, %cst_57 {dimension_numbers = #tpu.dot_dimension_numbers<[1], [1], [0], [0], [0, 0, 1, 0], [], []>} : vector<16x8xbf16>, vector<16x8xbf16>, vector<16x16xf32> -> vector<16x16xf32>
    %143 = vector.broadcast %99 : vector<1x16xf32> to vector<16x16xf32>
    %144 = arith.addf %142, %143 : vector<16x16xf32>
    %cst_58 = arith.constant dense<0xFF800000> : vector<16xf32>
    %145 = vector.multi_reduction <maximumf>, %144, %cst_58 [1] : vector<16x16xf32> to vector<16xf32>
    %146 = vector.shape_cast %145 : vector<16xf32> to vector<16x1xf32>
    %147 = vector.broadcast %146 : vector<16x1xf32> to vector<16x16xf32>
    %148 = arith.subf %144, %147 : vector<16x16xf32>
    %149 = math.exp %148 : vector<16x16xf32>
    %cst_59 = arith.constant dense<0.000000e+00> : vector<16xf32>
    %150 = vector.multi_reduction <add>, %149, %cst_59 [1] : vector<16x16xf32> to vector<16xf32>
    %151 = vector.shape_cast %150 : vector<16xf32> to vector<16x1xf32>
    %152 = arith.truncf %149 : vector<16x16xf32> to vector<16x16xbf16>
    %cst_60 = arith.constant dense<0.000000e+00> : vector<16x8xf32>
    %153 = tpu.matmul %152, %141, %cst_60 {dimension_numbers = #tpu.dot_dimension_numbers<[1], [0], [0], [1], [0, 0, 1, 1], [], []>} : vector<16x16xbf16>, vector<16x8xbf16>, vector<16x8xf32> -> vector<16x8xf32>
    %154 = tpu.reciprocal %151 {approx = true} : vector<16x1xf32> -> vector<16x1xf32>
    %155 = vector.broadcast %154 : vector<16x1xf32> to vector<16x8xf32>
    %156 = arith.mulf %153, %155 : vector<16x8xf32>
    %157 = vector.extract_strided_slice %100 {offsets = [0, 24], sizes = [16, 8], strides = [1, 1]} : vector<16x32xbf16> to vector<16x8xbf16>
    %158 = vector.extract_strided_slice %101 {offsets = [0, 24], sizes = [16, 8], strides = [1, 1]} : vector<16x32xbf16> to vector<16x8xbf16>
    %159 = vector.extract_strided_slice %102 {offsets = [0, 24], sizes = [16, 8], strides = [1, 1]} : vector<16x32xbf16> to vector<16x8xbf16>
    %cst_61 = arith.constant dense<0.000000e+00> : vector<16x16xf32>
    %160 = tpu.matmul %157, %158, %cst_61 {dimension_numbers = #tpu.dot_dimension_numbers<[1], [1], [0], [0], [0, 0, 1, 0], [], []>} : vector<16x8xbf16>, vector<16x8xbf16>, vector<16x16xf32> -> vector<16x16xf32>
    %161 = vector.broadcast %99 : vector<1x16xf32> to vector<16x16xf32>
    %162 = arith.addf %160, %161 : vector<16x16xf32>
    %cst_62 = arith.constant dense<0xFF800000> : vector<16xf32>
    %163 = vector.multi_reduction <maximumf>, %162, %cst_62 [1] : vector<16x16xf32> to vector<16xf32>
    %164 = vector.shape_cast %163 : vector<16xf32> to vector<16x1xf32>
    %165 = vector.broadcast %164 : vector<16x1xf32> to vector<16x16xf32>
    %166 = arith.subf %162, %165 : vector<16x16xf32>
    %167 = math.exp %166 : vector<16x16xf32>
    %cst_63 = arith.constant dense<0.000000e+00> : vector<16xf32>
    %168 = vector.multi_reduction <add>, %167, %cst_63 [1] : vector<16x16xf32> to vector<16xf32>
    %169 = vector.shape_cast %168 : vector<16xf32> to vector<16x1xf32>
    %170 = arith.truncf %167 : vector<16x16xf32> to vector<16x16xbf16>
    %cst_64 = arith.constant dense<0.000000e+00> : vector<16x8xf32>
    %171 = tpu.matmul %170, %159, %cst_64 {dimension_numbers = #tpu.dot_dimension_numbers<[1], [0], [0], [1], [0, 0, 1, 1], [], []>} : vector<16x16xbf16>, vector<16x8xbf16>, vector<16x8xf32> -> vector<16x8xf32>
    %172 = tpu.reciprocal %169 {approx = true} : vector<16x1xf32> -> vector<16x1xf32>
    %173 = vector.broadcast %172 : vector<16x1xf32> to vector<16x8xf32>
    %174 = arith.mulf %171, %173 : vector<16x8xf32>
    %175 = tpu.concatenate %120, %138, %156, %174 in 1 : vector<16x8xf32>, vector<16x8xf32>, vector<16x8xf32>, vector<16x8xf32> -> vector<16x32xf32>
    %176 = arith.truncf %175 : vector<16x32xf32> to vector<16x32xbf16>
    %cst_65 = arith.constant dense<0.000000e+00> : vector<16x32xf32>
    %177 = tpu.matmul %176, %5, %cst_65 {dimension_numbers = #tpu.dot_dimension_numbers<[1], [0], [0], [1], [0, 0, 1, 1], [], []>} : vector<16x32xbf16>, vector<32x32xbf16>, vector<16x32xf32> -> vector<16x32xf32>
    %178 = vector.broadcast %4 : vector<1x32xf32> to vector<16x32xf32>
    %179 = arith.addf %177, %178 : vector<16x32xf32>
    %c0_66 = arith.constant 0 : index
    %c0_67 = arith.constant 0 : index
    %c0_68 = arith.constant 0 : index
    %180 = vector.load %arg1[%c0_66, %c0_67, %c0_68] : memref<1x16x32xf32, #tpu.memory_space<vmem>>, vector<1x16x32xf32>
    %181 = vector.shape_cast %180 : vector<1x16x32xf32> to vector<16x32xf32>
    %182 = arith.addf %179, %181 : vector<16x32xf32>
    %cst_69 = arith.constant dense<0.000000e+00> : vector<16xf32>
    %183 = vector.multi_reduction <add>, %182, %cst_69 [1] : vector<16x32xf32> to vector<16xf32>
    %184 = vector.shape_cast %183 : vector<16xf32> to vector<16x1xf32>
    %cst_70 = arith.constant 3.200000e+01 : f32
    %185 = vector.broadcast %cst_70 : f32 to vector<16x1xf32>
    %186 = arith.divf %184, %185 : vector<16x1xf32>
    %187 = arith.mulf %182, %182 : vector<16x32xf32>
    %cst_71 = arith.constant dense<0.000000e+00> : vector<16xf32>
    %188 = vector.multi_reduction <add>, %187, %cst_71 [1] : vector<16x32xf32> to vector<16xf32>
    %189 = vector.shape_cast %188 : vector<16xf32> to vector<16x1xf32>
    %cst_72 = arith.constant 3.200000e+01 : f32
    %190 = vector.broadcast %cst_72 : f32 to vector<16x1xf32>
    %191 = arith.divf %189, %190 : vector<16x1xf32>
    %192 = arith.mulf %186, %186 : vector<16x1xf32>
    %193 = arith.subf %191, %192 : vector<16x1xf32>
    %194 = vector.broadcast %186 : vector<16x1xf32> to vector<16x32xf32>
    %195 = arith.subf %182, %194 : vector<16x32xf32>
    %cst_73 = arith.constant 9.99999974E-6 : f32
    %196 = vector.broadcast %cst_73 : f32 to vector<16x1xf32>
    %197 = arith.addf %193, %196 : vector<16x1xf32>
    %198 = math.rsqrt %197 : vector<16x1xf32>
    %199 = vector.broadcast %198 : vector<16x1xf32> to vector<16x32xf32>
    %200 = arith.mulf %195, %199 : vector<16x32xf32>
    %201 = vector.broadcast %2 : vector<1x32xf32> to vector<16x32xf32>
    %202 = arith.mulf %200, %201 : vector<16x32xf32>
    %203 = vector.broadcast %3 : vector<1x32xf32> to vector<16x32xf32>
    %204 = arith.addf %202, %203 : vector<16x32xf32>
    %c0_74 = arith.constant 0 : index
    %c0_75 = arith.constant 0 : index
    %c0_76 = arith.constant 0 : index
    %205 = vector.load %arg14[%c0_74, %c0_75, %c0_76] : memref<1x16x32xf32, #tpu.memory_space<vmem>>, vector<1x16x32xf32>
    %206 = vector.shape_cast %205 : vector<1x16x32xf32> to vector<16x32xf32>
    %207 = vector.shape_cast %204 : vector<16x32xf32> to vector<1x16x32xf32>
    tpu.vector_store %arg14[%c0_74, %c0_75, %c0_76], %207 {strides = array<i32>} : memref<1x16x32xf32, #tpu.memory_space<vmem>>, vector<1x16x32xf32>,
    return
  }
  func.func @transform_0(%arg0: i32) -> (i32, i32, i32) {
    %c0_i32 = arith.constant 0 : i32
    %c0_i32_0 = arith.constant 0 : i32
    %c0_i32_1 = arith.constant 0 : i32
    return %arg0, %c0_i32, %c0_i32_0 : i32, i32, i32
  }
  func.func @transform_1(%arg0: i32) -> (i32, i32, i32) {
    %c0_i32 = arith.constant 0 : i32
    %c0_i32_0 = arith.constant 0 : i32
    %c0_i32_1 = arith.constant 0 : i32
    return %arg0, %c0_i32, %c0_i32_0 : i32, i32, i32
  }
  func.func @transform_2(%arg0: i32) -> (i32, i32, i32) {
    %c0_i32 = arith.constant 0 : i32
    %c0_i32_0 = arith.constant 0 : i32
    %c0_i32_1 = arith.constant 0 : i32
    return %arg0, %c0_i32, %c0_i32_0 : i32, i32, i32
  }
  func.func @transform_3(%arg0: i32) -> (i32, i32, i32) {
    %c0_i32 = arith.constant 0 : i32
    %c0_i32_0 = arith.constant 0 : i32
    %c0_i32_1 = arith.constant 0 : i32
    return %arg0, %c0_i32, %c0_i32_0 : i32, i32, i32
  }
  func.func @transform_4(%arg0: i32) -> (i32, i32) {
    %c0_i32 = arith.constant 0 : i32
    %c0_i32_0 = arith.constant 0 : i32
    %c0_i32_1 = arith.constant 0 : i32
    return %c0_i32, %c0_i32_0 : i32, i32
  }
  func.func @transform_5(%arg0: i32) -> (i32, i32) {
    %c0_i32 = arith.constant 0 : i32
    %c0_i32_0 = arith.constant 0 : i32
    %c0_i32_1 = arith.constant 0 : i32
    return %c0_i32, %c0_i32_0 : i32, i32
  }
  func.func @transform_6(%arg0: i32) -> (i32, i32) {
    %c0_i32 = arith.constant 0 : i32
    %c0_i32_0 = arith.constant 0 : i32
    %c0_i32_1 = arith.constant 0 : i32
    return %c0_i32, %c0_i32_0 : i32, i32
  }
  func.func @transform_7(%arg0: i32) -> (i32, i32) {
    %c0_i32 = arith.constant 0 : i32
    %c0_i32_0 = arith.constant 0 : i32
    %c0_i32_1 = arith.constant 0 : i32
    return %c0_i32, %c0_i32_0 : i32, i32
  }
  func.func @transform_8(%arg0: i32) -> (i32, i32) {
    %c0_i32 = arith.constant 0 : i32
    %c0_i32_0 = arith.constant 0 : i32
    %c0_i32_1 = arith.constant 0 : i32
    return %c0_i32, %c0_i32_0 : i32, i32
  }
  func.func @transform_9(%arg0: i32) -> (i32, i32) {
    %c0_i32 = arith.constant 0 : i32
    %c0_i32_0 = arith.constant 0 : i32
    %c0_i32_1 = arith.constant 0 : i32
    return %c0_i32, %c0_i32_0 : i32, i32
  }
  func.func @transform_10(%arg0: i32) -> (i32, i32) {
    %c0_i32 = arith.constant 0 : i32
    %c0_i32_0 = arith.constant 0 : i32
    %c0_i32_1 = arith.constant 0 : i32
    return %c0_i32, %c0_i32_0 : i32, i32
  }
  func.func @transform_11(%arg0: i32) -> (i32, i32) {
    %c0_i32 = arith.constant 0 : i32
    %c0_i32_0 = arith.constant 0 : i32
    %c0_i32_1 = arith.constant 0 : i32
    return %c0_i32, %c0_i32_0 : i32, i32
  }
  func.func @transform_12(%arg0: i32) -> (i32, i32) {
    %c0_i32 = arith.constant 0 : i32
    %c0_i32_0 = arith.constant 0 : i32
    %c0_i32_1 = arith.constant 0 : i32
    return %c0_i32, %c0_i32_0 : i32, i32
  }
  func.func @transform_13(%arg0: i32) -> (i32, i32, i32) {
    %c0_i32 = arith.constant 0 : i32
    %c0_i32_0 = arith.constant 0 : i32
    %c0_i32_1 = arith.constant 0 : i32
    return %arg0, %c0_i32, %c0_i32_0 : i32, i32, i32
  }
}

</mosaic_0001>

<llo_original>
// kernel: tpu_custom_call.1
$region0: #{tpu_custom_call.1}
  #allocation0 [shape = 'u32[]', space=smem, size = 0x4, offset = 0x4, fixed_abs, tag = 'smem constant byte address 0x4 - core index']
  #allocation1 [shape = 'u32[144,128]{1,0:T(1,128)}', space=vmem, size = 0x12000, scoped, tag = 'internal scratch']
  %s0 = inlined_call_operand.hbm [shape: f32[2,16,32], index: 0, kind: input, shape index: {}]
  %s1 = inlined_call_operand.hbm [shape: f32[2,16,32], index: 1, kind: input, shape index: {}]
  %s2 = inlined_call_operand.hbm [shape: f32[2,16,32], index: 2, kind: input, shape index: {}]
  %s3 = inlined_call_operand.vmem [shape: f32[2,1,16], index: 3, kind: input, shape index: {}]
  %s4 = inlined_call_operand.hbm [shape: bf16[32,32], index: 4, kind: input, shape index: {}]
  %s5 = inlined_call_operand.hbm [shape: bf16[32,32], index: 5, kind: input, shape index: {}]
  %s6 = inlined_call_operand.hbm [shape: bf16[32,32], index: 6, kind: input, shape index: {}]
  %s7 = inlined_call_operand.hbm [shape: bf16[32,32], index: 7, kind: input, shape index: {}]
  %s8 = inlined_call_operand.vmem [shape: f32[1,32], index: 8, kind: input, shape index: {}]
  %s9 = inlined_call_operand.vmem [shape: f32[1,32], index: 9, kind: input, shape index: {}]
  %s10 = inlined_call_operand.vmem [shape: f32[1,32], index: 10, kind: input, shape index: {}]
  %s11 = inlined_call_operand.vmem [shape: f32[1,32], index: 11, kind: input, shape index: {}]
  %s12 = inlined_call_operand.vmem [shape: f32[1,32], index: 12, kind: input, shape index: {}]
  %s13 = inlined_call_operand.hbm [shape: f32[2,16,32], index: 13, kind: output, shape index: {}]
  %s14 = sld [smem:[#allocation0]]
  $region113: #{tpu_custom_call.1} parent=0
    _
  %s16 = ssub.s32 1, %s14
  %s17 = scalar_select 0, %s16, %s14
  $region1: #{tpu_custom_call.1} parent=0
    #allocation2 [shape = 'u8[16384]{0}', space=vmem, size = 0x4000, scoped, tag = 'input window, operand 0']
    #allocation3 [shape = 's32[2]{0}', space=sflag, size = 0x8, scoped, tag = 'scoped memory for tpu_custom_call.1']
    #allocation4 [shape = 's32[2]{0}', space=sflag, size = 0x8, scoped, tag = 'scoped memory for tpu_custom_call.1']
    #allocation5 [shape = 'u8[16384]{0}', space=vmem, size = 0x4000, scoped, tag = 'input window, operand 1']
    #allocation6 [shape = 's32[2]{0}', space=sflag, size = 0x8, scoped, tag = 'scoped memory for tpu_custom_call.1']
    #allocation7 [shape = 'u8[16384]{0}', space=vmem, size = 0x4000, scoped, tag = 'input window, operand 2']
    #allocation8 [shape = 'u8[8192]{0}', space=vmem, size = 0x2000, scoped, tag = 'input window, operand 4, single buffered']
    #allocation9 [shape = 's32[1]{0}', space=sflag, size = 0x4, scoped, tag = 'scoped memory for tpu_custom_call.1']
    #allocation10 [shape = 'u8[8192]{0}', space=vmem, size = 0x2000, scoped, tag = 'input window, operand 5, single buffered']
    #allocation11 [shape = 'u8[8192]{0}', space=vmem, size = 0x2000, scoped, tag = 'input window, operand 6, single buffered']
    #allocation12 [shape = 's32[1]{0}', space=sflag, size = 0x4, scoped, tag = 'scoped memory for tpu_custom_call.1']
    #allocation13 [shape = 'u8[8192]{0}', space=vmem, size = 0x2000, scoped, tag = 'input window, operand 7, single buffered']
    #allocation14 [shape = 'u8[16384]{0}', space=vmem, size = 0x4000, scoped, tag = 'output window, operand 0']
    %18 = vsyncpa [#allocation3], 0
    %s19 = scalar_lea.sflag [#allocation3], 1
    %20 = vsyncpa %s19, 0
    %21 = vsyncpa [#allocation6], 0
    %s22 = scalar_lea.sflag [#allocation6], 1
    %23 = vsyncpa %s22, 0
    %24 = vsyncpa [#allocation9], 0
    %25 = vsyncpa [#allocation12], 0
    %26 = vsyncpa [#allocation4], 0
    %s27 = scalar_lea.sflag [#allocation4], 1
    %28 = vsyncpa %s27, 0
    loop: start=0, step=1, limit=4
    $region2: #{tpu_custom_call.1} parent=1 // loop_pre_header
      _
    $region3: #{tpu_custom_call.1} parent=1 // loop_header
      %s30 = sphi 0, %s34
      %p31 = scmp.ge.s32.totalorder %s30, 4
      %s40 = sphi 0, %s42
      %s43 = sphi 0, %s40
      %s44 = sphi 0, %s43
      %s60 = sphi 0, %s44
      %s66 = sphi 0, %s68
      %s69 = sphi 0, %s66
      %s70 = sphi 0, %s69
      %s86 = sphi 0, %s70
      %s92 = sphi 0, %s94
      %s95 = sphi 0, %s92
      %s96 = sphi 0, %s95
      %s112 = sphi 0, %s96
      %s118 = sphi 0, %s120
      %s121 = sphi 0, %s118
      %s122 = sphi 0, %s121
      %s138 = sphi 0, %s122
      %s142 = sphi 0, %s142
      %s144 = sphi 0, %s142
      %s145 = sphi 0, %s144
      %s159 = sphi 0, %s145
      %s163 = sphi 0, %s163
      %s165 = sphi 0, %s163
      %s166 = sphi 0, %s165
      %s180 = sphi 0, %s166
      %s184 = sphi 0, %s184
      %s186 = sphi 0, %s184
      %s187 = sphi 0, %s186
      %s201 = sphi 0, %s187
      %s205 = sphi 0, %s205
      %s207 = sphi 0, %s205
      %s208 = sphi 0, %s207
      %s222 = sphi 0, %s208
      %s226 = sphi 0, %s226
      %s228 = sphi 0, %s226
      %s229 = sphi 0, %s228
      %s243 = sphi 0, %s229
      %s247 = sphi 0, %s247
      %s249 = sphi 0, %s247
      %s250 = sphi 0, %s249
      %s264 = sphi 0, %s250
      %s268 = sphi 0, %s268
      %s270 = sphi 0, %s268
      %s271 = sphi 0, %s270
      %s285 = sphi 0, %s271
      %s289 = sphi 0, %s289
      %s291 = sphi 0, %s289
      %s292 = sphi 0, %s291
      %s306 = sphi 0, %s292
      %s310 = sphi 0, %s310
      %s312 = sphi 0, %s310
      %s313 = sphi 0, %s312
      %s327 = sphi 0, %s313
      %s333 = sphi 0, %s335
      %s336 = sphi 0, %s333
      %s337 = sphi 0, %s336
      %s353 = sphi 0, %s337
    $region4: #{tpu_custom_call.1} parent=1 // loop_header_branch
      %33 = sbr.rel (%p31) target = $region8
    $region5: #{tpu_custom_call.1} parent=1 // loop_body
      %s35 = ssub.s32 %s30, 1
      %s36 = ssub.s32 %s30, 2
      %s37 = sadd.s32 %s30, 1
      %s38 = ssub.s32 %s30, %s37
      %p39 = scmp.eq.s32.totalorder %s38, 0
      %s41 = sadd.s32 %s40, 1
      %s42 = scalar_select %p39, %s40, %s41
      %p45 = pneg %p39
      %p46 = scmp.eq.s32.totalorder %s30, 1
      %p47 = por %p45, %p46
      %p48 = scmp.ne.s32.totalorder %s40, %s43
      %p49 = scmp.eq.s32.totalorder %s30, 0
      %p50 = por %p48, %p49
      %p51 = scmp.ne.s32.totalorder %s40, %s43
      %p52 = scmp.eq.s32.totalorder %s35, 1
      %p53 = por %p51, %p52
      %p54 = scmp.ne.s32.totalorder %s43, %s44
      %p55 = scmp.eq.s32.totalorder %s35, 0
      %p56 = por %p54, %p55
      %p57 = scmp.ne.s32.totalorder %s43, %s44
      %p58 = scmp.eq.s32.totalorder %s36, 1
      %p59 = por %p57, %p58
      %p61 = scmp.ne.s32.totalorder %s44, %s60
      %p62 = scmp.eq.s32.totalorder %s36, 0
      %p63 = por %p61, %p62
      %s64 = ssub.s32 %s30, %s37
      %p65 = scmp.eq.s32.totalorder %s64, 0
      %s67 = sadd.s32 %s66, 1
      %s68 = scalar_select %p65, %s66, %s67
      %p71 = pneg %p65
      %p72 = scmp.eq.s32.totalorder %s30, 1
      %p73 = por %p71, %p72
      %p74 = scmp.ne.s32.totalorder %s66, %s69
      %p75 = scmp.eq.s32.totalorder %s30, 0
      %p76 = por %p74, %p75
      %p77 = scmp.ne.s32.totalorder %s66, %s69
      %p78 = scmp.eq.s32.totalorder %s35, 1
      %p79 = por %p77, %p78
      %p80 = scmp.ne.s32.totalorder %s69, %s70
      %p81 = scmp.eq.s32.totalorder %s35, 0
      %p82 = por %p80, %p81
      %p83 = scmp.ne.s32.totalorder %s69, %s70
      %p84 = scmp.eq.s32.totalorder %s36, 1
      %p85 = por %p83, %p84
      %p87 = scmp.ne.s32.totalorder %s70, %s86
      %p88 = scmp.eq.s32.totalorder %s36, 0
      %p89 = por %p87, %p88
      %s90 = ssub.s32 %s30, %s37
      %p91 = scmp.eq.s32.totalorder %s90, 0
      %s93 = sadd.s32 %s92, 1
      %s94 = scalar_select %p91, %s92, %s93
      %p97 = pneg %p91
      %p98 = scmp.eq.s32.totalorder %s30, 1
      %p99 = por %p97, %p98
      %p100 = scmp.ne.s32.totalorder %s92, %s95
      %p101 = scmp.eq.s32.totalorder %s30, 0
      %p102 = por %p100, %p101
      %p103 = scmp.ne.s32.totalorder %s92, %s95
      %p104 = scmp.eq.s32.totalorder %s35, 1
      %p105 = por %p103, %p104
      %p106 = scmp.ne.s32.totalorder %s95, %s96
      %p107 = scmp.eq.s32.totalorder %s35, 0
      %p108 = por %p106, %p107
      %p109 = scmp.ne.s32.totalorder %s95, %s96
      %p110 = scmp.eq.s32.totalorder %s36, 1
      %p111 = por %p109, %p110
      %p113 = scmp.ne.s32.totalorder %s96, %s112
      %p114 = scmp.eq.s32.totalorder %s36, 0
      %p115 = por %p113, %p114
      %s116 = ssub.s32 %s30, %s37
      %p117 = scmp.eq.s32.totalorder %s116, 0
      %s119 = sadd.s32 %s118, 1
      %s120 = scalar_select %p117, %s118, %s119
      %p123 = pneg %p117
      %p124 = scmp.eq.s32.totalorder %s30, 1
      %p125 = por %p123, %p124
      %p126 = scmp.ne.s32.totalorder %s118, %s121
      %p127 = scmp.eq.s32.totalorder %s30, 0
      %p128 = por %p126, %p127
      %p129 = scmp.ne.s32.totalorder %s118, %s121
      %p130 = scmp.eq.s32.totalorder %s35, 1
      %p131 = por %p129, %p130
      %p132 = scmp.ne.s32.totalorder %s121, %s122
      %p133 = scmp.eq.s32.totalorder %s35, 0
      %p134 = por %p132, %p133
      %p135 = scmp.ne.s32.totalorder %s121, %s122
      %p136 = scmp.eq.s32.totalorder %s36, 1
      %p137 = por %p135, %p136
      %p139 = scmp.ne.s32.totalorder %s122, %s138
      %p140 = scmp.eq.s32.totalorder %s36, 0
      %p141 = por %p139, %p140
      %s143 = sadd.s32 %s142, 1
      %p146 = scmp.eq.s32.totalorder %s30, 1
      %p147 = scmp.ne.s32.totalorder %s142, %s144
      %p148 = scmp.eq.s32.totalorder %s30, 0
      %p149 = por %p147, %p148
      %p150 = scmp.ne.s32.totalorder %s142, %s144
      %p151 = scmp.eq.s32.totalorder %s35, 1
      %p152 = por %p150, %p151
      %p153 = scmp.ne.s32.totalorder %s144, %s145
      %p154 = scmp.eq.s32.totalorder %s35, 0
      %p155 = por %p153, %p154
      %p156 = scmp.ne.s32.totalorder %s144, %s145
      %p157 = scmp.eq.s32.totalorder %s36, 1
      %p158 = por %p156, %p157
      %p160 = scmp.ne.s32.totalorder %s145, %s159
      %p161 = scmp.eq.s32.totalorder %s36, 0
      %p162 = por %p160, %p161
      %s164 = sadd.s32 %s163, 1
      %p167 = scmp.eq.s32.totalorder %s30, 1
      %p168 = scmp.ne.s32.totalorder %s163, %s165
      %p169 = scmp.eq.s32.totalorder %s30, 0
      %p170 = por %p168, %p169
      %p171 = scmp.ne.s32.totalorder %s163, %s165
      %p172 = scmp.eq.s32.totalorder %s35, 1
      %p173 = por %p171, %p172
      %p174 = scmp.ne.s32.totalorder %s165, %s166
      %p175 = scmp.eq.s32.totalorder %s35, 0
      %p176 = por %p174, %p175
      %p177 = scmp.ne.s32.totalorder %s165, %s166
      %p178 = scmp.eq.s32.totalorder %s36, 1
      %p179 = por %p177, %p178
      %p181 = scmp.ne.s32.totalorder %s166, %s180
      %p182 = scmp.eq.s32.totalorder %s36, 0
      %p183 = por %p181, %p182
      %s185 = sadd.s32 %s184, 1
      %p188 = scmp.eq.s32.totalorder %s30, 1
      %p189 = scmp.ne.s32.totalorder %s184, %s186
      %p190 = scmp.eq.s32.totalorder %s30, 0
      %p191 = por %p189, %p190
      %p192 = scmp.ne.s32.totalorder %s184, %s186
      %p193 = scmp.eq.s32.totalorder %s35, 1
      %p194 = por %p192, %p193
      %p195 = scmp.ne.s32.totalorder %s186, %s187
      %p196 = scmp.eq.s32.totalorder %s35, 0
      %p197 = por %p195, %p196
      %p198 = scmp.ne.s32.totalorder %s186, %s187
      %p199 = scmp.eq.s32.totalorder %s36, 1
      %p200 = por %p198, %p199
      %p202 = scmp.ne.s32.totalorder %s187, %s201
      %p203 = scmp.eq.s32.totalorder %s36, 0
      %p204 = por %p202, %p203
      %s206 = sadd.s32 %s205, 1
      %p209 = scmp.eq.s32.totalorder %s30, 1
      %p210 = scmp.ne.s32.totalorder %s205, %s207
      %p211 = scmp.eq.s32.totalorder %s30, 0
      %p212 = por %p210, %p211
      %p213 = scmp.ne.s32.totalorder %s205, %s207
      %p214 = scmp.eq.s32.totalorder %s35, 1
      %p215 = por %p213, %p214
      %p216 = scmp.ne.s32.totalorder %s207, %s208
      %p217 = scmp.eq.s32.totalorder %s35, 0
      %p218 = por %p216, %p217
      %p219 = scmp.ne.s32.totalorder %s207, %s208
      %p220 = scmp.eq.s32.totalorder %s36, 1
      %p221 = por %p219, %p220
      %p223 = scmp.ne.s32.totalorder %s208, %s222
      %p224 = scmp.eq.s32.totalorder %s36, 0
      %p225 = por %p223, %p224
      %s227 = sadd.s32 %s226, 1
      %p230 = scmp.eq.s32.totalorder %s30, 1
      %p231 = scmp.ne.s32.totalorder %s226, %s228
      %p232 = scmp.eq.s32.totalorder %s30, 0
      %p233 = por %p231, %p232
      %p234 = scmp.ne.s32.totalorder %s226, %s228
      %p235 = scmp.eq.s32.totalorder %s35, 1
      %p236 = por %p234, %p235
      %p237 = scmp.ne.s32.totalorder %s228, %s229
      %p238 = scmp.eq.s32.totalorder %s35, 0
      %p239 = por %p237, %p238
      %p240 = scmp.ne.s32.totalorder %s228, %s229
      %p241 = scmp.eq.s32.totalorder %s36, 1
      %p242 = por %p240, %p241
      %p244 = scmp.ne.s32.totalorder %s229, %s243
      %p245 = scmp.eq.s32.totalorder %s36, 0
      %p246 = por %p244, %p245
      %s248 = sadd.s32 %s247, 1
      %p251 = scmp.eq.s32.totalorder %s30, 1
      %p252 = scmp.ne.s32.totalorder %s247, %s249
      %p253 = scmp.eq.s32.totalorder %s30, 0
      %p254 = por %p252, %p253
      %p255 = scmp.ne.s32.totalorder %s247, %s249
      %p256 = scmp.eq.s32.totalorder %s35, 1
      %p257 = por %p255, %p256
      %p258 = scmp.ne.s32.totalorder %s249, %s250
      %p259 = scmp.eq.s32.totalorder %s35, 0
      %p260 = por %p258, %p259
      %p261 = scmp.ne.s32.totalorder %s249, %s250
      %p262 = scmp.eq.s32.totalorder %s36, 1
      %p263 = por %p261, %p262
      %p265 = scmp.ne.s32.totalorder %s250, %s264
      %p266 = scmp.eq.s32.totalorder %s36, 0
      %p267 = por %p265, %p266
      %s269 = sadd.s32 %s268, 1
      %p272 = scmp.eq.s32.totalorder %s30, 1
      %p273 = scmp.ne.s32.totalorder %s268, %s270
      %p274 = scmp.eq.s32.totalorder %s30, 0
      %p275 = por %p273, %p274
      %p276 = scmp.ne.s32.totalorder %s268, %s270
      %p277 = scmp.eq.s32.totalorder %s35, 1
      %p278 = por %p276, %p277
      %p279 = scmp.ne.s32.totalorder %s270, %s271
      %p280 = scmp.eq.s32.totalorder %s35, 0
      %p281 = por %p279, %p280
      %p282 = scmp.ne.s32.totalorder %s270, %s271
      %p283 = scmp.eq.s32.totalorder %s36, 1
      %p284 = por %p282, %p283
      %p286 = scmp.ne.s32.totalorder %s271, %s285
      %p287 = scmp.eq.s32.totalorder %s36, 0
      %p288 = por %p286, %p287
      %s290 = sadd.s32 %s289, 1
      %p293 = scmp.eq.s32.totalorder %s30, 1
      %p294 = scmp.ne.s32.totalorder %s289, %s291
      %p295 = scmp.eq.s32.totalorder %s30, 0
      %p296 = por %p294, %p295
      %p297 = scmp.ne.s32.totalorder %s289, %s291
      %p298 = scmp.eq.s32.totalorder %s35, 1
      %p299 = por %p297, %p298
      %p300 = scmp.ne.s32.totalorder %s291, %s292
      %p301 = scmp.eq.s32.totalorder %s35, 0
      %p302 = por %p300, %p301
      %p303 = scmp.ne.s32.totalorder %s291, %s292
      %p304 = scmp.eq.s32.totalorder %s36, 1
      %p305 = por %p303, %p304
      %p307 = scmp.ne.s32.totalorder %s292, %s306
      %p308 = scmp.eq.s32.totalorder %s36, 0
      %p309 = por %p307, %p308
      %s311 = sadd.s32 %s310, 1
      %p314 = scmp.eq.s32.totalorder %s30, 1
      %p315 = scmp.ne.s32.totalorder %s310, %s312
      %p316 = scmp.eq.s32.totalorder %s30, 0
      %p317 = por %p315, %p316
      %p318 = scmp.ne.s32.totalorder %s310, %s312
      %p319 = scmp.eq.s32.totalorder %s35, 1
      %p320 = por %p318, %p319
      %p321 = scmp.ne.s32.totalorder %s312, %s313
      %p322 = scmp.eq.s32.totalorder %s35, 0
      %p323 = por %p321, %p322
      %p324 = scmp.ne.s32.totalorder %s312, %s313
      %p325 = scmp.eq.s32.totalorder %s36, 1
      %p326 = por %p324, %p325
      %p328 = scmp.ne.s32.totalorder %s313, %s327
      %p329 = scmp.eq.s32.totalorder %s36, 0
      %p330 = por %p328, %p329
      %s331 = ssub.s32 %s30, %s37
      %p332 = scmp.eq.s32.totalorder %s331, 0
      %s334 = sadd.s32 %s333, 1
      %s335 = scalar_select %p332, %s333, %s334
      %p338 = pneg %p332
      %p339 = scmp.eq.s32.totalorder %s30, 1
      %p340 = por %p338, %p339
      %p341 = scmp.ne.s32.totalorder %s333, %s336
      %p342 = scmp.eq.s32.totalorder %s30, 0
      %p343 = por %p341, %p342
      %p344 = scmp.ne.s32.totalorder %s333, %s336
      %p345 = scmp.eq.s32.totalorder %s35, 1
      %p346 = por %p344, %p345
      %p347 = scmp.ne.s32.totalorder %s336, %s337
      %p348 = scmp.eq.s32.totalorder %s35, 0
      %p349 = por %p347, %p348
      %p350 = scmp.ne.s32.totalorder %s336, %s337
      %p351 = scmp.eq.s32.totalorder %s36, 1
      %p352 = por %p350, %p351
      %p354 = scmp.ne.s32.totalorder %s337, %s353
      %p355 = scmp.eq.s32.totalorder %s36, 0
      %p356 = por %p354, %p355
      %p357 = scmp.le.s32.totalorder 1, %s30
      %p358 = scmp.lt.s32.totalorder %s30, 3
      %p359 = pnand %p357, %p358
      %p360 = pneg %p359
      // Predicated region
      $region9: #{tpu_custom_call.1} parent=5 // pred_check
        _
      $region10: #{tpu_custom_call.1} parent=5 // pred_check_branch
        %362 = sbr.rel (%p359) target = $region12
      $region11: #{tpu_custom_call.1} parent=5 // pred_region
        %s363 = ssub.s32 %s30, 1
        // Predicated region
        $region13: #{tpu_custom_call.1} parent=11 // pred_check
          %p364 = pneg %p155
        $region14: #{tpu_custom_call.1} parent=11 // pred_check_branch
          %366 = sbr.rel (%p364) target = $region16
        $region15: #{tpu_custom_call.1} parent=11 // pred_region
          %s368 = ssub.s32 256, 256
          %369 = vsyncadd [#allocation9], %s368
          %s370 = sshll.u32 [#allocation8], 4
          %s371 = int_to_ptr.vmem [resolvable:$true] %s370
          %376 = dma.hbm_to_vmem [thread:$0]  %s4, 256, %s371, [#allocation9], 64, 64, 4
        $region16: #{tpu_custom_call.1} parent=11 // pred_fallthru
          _
        // Predicated region
        $region17: #{tpu_custom_call.1} parent=11 // pred_check
          %p377 = pneg %p176
        $region18: #{tpu_custom_call.1} parent=11 // pred_check_branch
          %379 = sbr.rel (%p377) target = $region20
        $region19: #{tpu_custom_call.1} parent=11 // pred_region
          %s381 = ssub.s32 256, 256
          %382 = vsyncadd [#allocation9], %s381
          %s383 = sshll.u32 [#allocation10], 4
          %s384 = int_to_ptr.vmem [resolvable:$true] %s383
          %389 = dma.hbm_to_vmem [thread:$0]  %s5, 256, %s384, [#allocation9], 64, 64, 4
        $region20: #{tpu_custom_call.1} parent=11 // pred_fallthru
          _
        // Predicated region
        $region21: #{tpu_custom_call.1} parent=11 // pred_check
          %p390 = pneg %p197
        $region22: #{tpu_custom_call.1} parent=11 // pred_check_branch
          %392 = sbr.rel (%p390) target = $region24
        $region23: #{tpu_custom_call.1} parent=11 // pred_region
          %s394 = ssub.s32 256, 256
          %395 = vsyncadd [#allocation12], %s394
          %s396 = sshll.u32 [#allocation11], 4
          %s397 = int_to_ptr.vmem [resolvable:$true] %s396
          %402 = dma.hbm_to_vmem [thread:$0]  %s6, 256, %s397, [#allocation12], 64, 64, 4
        $region24: #{tpu_custom_call.1} parent=11 // pred_fallthru
          _
        // Predicated region
        $region25: #{tpu_custom_call.1} parent=11 // pred_check
          %p403 = pneg %p218
        $region26: #{tpu_custom_call.1} parent=11 // pred_check_branch
          %405 = sbr.rel (%p403) target = $region28
        $region27: #{tpu_custom_call.1} parent=11 // pred_region
          %s407 = ssub.s32 256, 256
          %408 = vsyncadd [#allocation12], %s407
          %s409 = sshll.u32 [#allocation13], 4
          %s410 = int_to_ptr.vmem [resolvable:$true] %s409
          %415 = dma.hbm_to_vmem [thread:$0]  %s7, 256, %s410, [#allocation12], 64, 64, 4
        $region28: #{tpu_custom_call.1} parent=11 // pred_fallthru
          _
        // Predicated region
        $region29: #{tpu_custom_call.1} parent=11 // pred_check
          %p416 = pneg %p239
        $region30: #{tpu_custom_call.1} parent=11 // pred_check_branch
          %418 = sbr.rel (%p416) target = $region32
        $region31: #{tpu_custom_call.1} parent=11 // pred_region
          _
        $region32: #{tpu_custom_call.1} parent=11 // pred_fallthru
          _
        // Predicated region
        $region33: #{tpu_custom_call.1} parent=11 // pred_check
          %p419 = pneg %p260
        $region34: #{tpu_custom_call.1} parent=11 // pred_check_branch
          %421 = sbr.rel (%p419) target = $region36
        $region35: #{tpu_custom_call.1} parent=11 // pred_region
          _
        $region36: #{tpu_custom_call.1} parent=11 // pred_fallthru
          _
        // Predicated region
        $region37: #{tpu_custom_call.1} parent=11 // pred_check
          %p422 = pneg %p281
        $region38: #{tpu_custom_call.1} parent=11 // pred_check_branch
          %424 = sbr.rel (%p422) target = $region40
        $region39: #{tpu_custom_call.1} parent=11 // pred_region
          _
        $region40: #{tpu_custom_call.1} parent=11 // pred_fallthru
          _
        // Predicated region
        $region41: #{tpu_custom_call.1} parent=11 // pred_check
          %p425 = pneg %p302
        $region42: #{tpu_custom_call.1} parent=11 // pred_check_branch
          %427 = sbr.rel (%p425) target = $region44
        $region43: #{tpu_custom_call.1} parent=11 // pred_region
          _
        $region44: #{tpu_custom_call.1} parent=11 // pred_fallthru
          _
        // Predicated region
        $region45: #{tpu_custom_call.1} parent=11 // pred_check
          %p428 = pneg %p323
        $region46: #{tpu_custom_call.1} parent=11 // pred_check_branch
          %430 = sbr.rel (%p428) target = $region48
        $region47: #{tpu_custom_call.1} parent=11 // pred_region
          _
        $region48: #{tpu_custom_call.1} parent=11 // pred_fallthru
          _
      $region12: #{tpu_custom_call.1} parent=5 // pred_fallthru
        _
      %p431 = scmp.lt.s32.totalorder %s30, 2
      // Predicated region
      $region49: #{tpu_custom_call.1} parent=5 // pred_check
        %p432 = pneg %p431
      $region50: #{tpu_custom_call.1} parent=5 // pred_check_branch
        %434 = sbr.rel (%p432) target = $region52
      $region51: #{tpu_custom_call.1} parent=5 // pred_region
        // Predicated region
        $region53: #{tpu_custom_call.1} parent=51 // pred_check
          %p435 = pneg %p50
        $region54: #{tpu_custom_call.1} parent=51 // pred_check_branch
          %437 = sbr.rel (%p435) target = $region56
        $region55: #{tpu_custom_call.1} parent=51 // pred_region
          %s438 = sand.u32 %s40, 1
          %s439 = scalar_lea.sflag [#allocation3], %s438
          %s440 = sand.u32 %s40, 1
          %s441 = smul.addr %s440, 16
          %s442 = scalar_lea.vmem [#allocation2], %s441
          %s444 = ssub.s32 256, 256
          %445 = vsyncadd %s439, %s444
          %s446 = smul.addr %s30, 2
          %s447 = smul.addr %s446, 128
          %s448 = scalar_lea.hbm %s0, %s447
          %s449 = sshll.u32 %s442, 4
          %s450 = int_to_ptr.vmem [resolvable:$true] %s449
          %455 = dma.hbm_to_vmem [thread:$0]  %s448, 256, %s450, %s439, 128, 128, 8
        $region56: #{tpu_custom_call.1} parent=51 // pred_fallthru
          _
        // Predicated region
        $region57: #{tpu_custom_call.1} parent=51 // pred_check
          %p456 = pneg %p76
        $region58: #{tpu_custom_call.1} parent=51 // pred_check_branch
          %458 = sbr.rel (%p456) target = $region60
        $region59: #{tpu_custom_call.1} parent=51 // pred_region
          %s459 = sand.u32 %s30, 1
          %s460 = scalar_lea.sflag [#allocation6], %s459
          %s461 = sand.u32 %s66, 1
          %s462 = smul.addr %s461, 16
          %s463 = scalar_lea.vmem [#allocation5], %s462
          %s465 = ssub.s32 256, 256
          %466 = vsyncadd %s460, %s465
          %s467 = smul.addr %s30, 2
          %s468 = smul.addr %s467, 128
          %s469 = scalar_lea.hbm %s1, %s468
          %s470 = sshll.u32 %s463, 4
          %s471 = int_to_ptr.vmem [resolvable:$true] %s470
          %476 = dma.hbm_to_vmem [thread:$0]  %s469, 256, %s471, %s460, 128, 128, 8
        $region60: #{tpu_custom_call.1} parent=51 // pred_fallthru
          _
        // Predicated region
        $region61: #{tpu_custom_call.1} parent=51 // pred_check
          %p477 = pneg %p102
        $region62: #{tpu_custom_call.1} parent=51 // pred_check_branch
          %479 = sbr.rel (%p477) target = $region64
        $region63: #{tpu_custom_call.1} parent=51 // pred_region
          %s480 = sand.u32 %s30, 1
          %s481 = scalar_lea.sflag [#allocation6], %s480
          %s482 = sand.u32 %s92, 1
          %s483 = smul.addr %s482, 16
          %s484 = scalar_lea.vmem [#allocation7], %s483
          %s486 = ssub.s32 256, 256
          %487 = vsyncadd %s481, %s486
          %s488 = smul.addr %s30, 2
          %s489 = smul.addr %s488, 128
          %s490 = scalar_lea.hbm %s2, %s489
          %s491 = sshll.u32 %s484, 4
          %s492 = int_to_ptr.vmem [resolvable:$true] %s491
          %497 = dma.hbm_to_vmem [thread:$0]  %s490, 256, %s492, %s481, 128, 128, 8
        $region64: #{tpu_custom_call.1} parent=51 // pred_fallthru
          _
        // Predicated region
        $region65: #{tpu_custom_call.1} parent=51 // pred_check
          %p498 = pneg %p128
        $region66: #{tpu_custom_call.1} parent=51 // pred_check_branch
          %500 = sbr.rel (%p498) target = $region68
        $region67: #{tpu_custom_call.1} parent=51 // pred_region
          %p501 = scmp.lt.s32.totalorder %s30, 1
          %s502 = scalar_select %p501, %s30, 1
          %s503 = scalar_lea.vmem %s3, %s502
        $region68: #{tpu_custom_call.1} parent=51 // pred_fallthru
          _
      $region52: #{tpu_custom_call.1} parent=5 // pred_fallthru
        _
      %p504 = scmp.le.s32.totalorder 1, %s30
      %p505 = scmp.lt.s32.totalorder %s30, 3
      %p506 = pnand %p504, %p505
      %p507 = pneg %p506
      // Predicated region
      $region69: #{tpu_custom_call.1} parent=5 // pred_check
        _
      $region70: #{tpu_custom_call.1} parent=5 // pred_check_branch
        %509 = sbr.rel (%p506) target = $region72
      $region71: #{tpu_custom_call.1} parent=5 // pred_region
        %s510 = ssub.s32 %s30, 1
        %s511 = sand.u32 %s43, 1
        %s512 = scalar_lea.sflag [#allocation3], %s511
        %s513 = sand.u32 %s43, 1
        %s514 = smul.addr %s513, 16
        %s515 = scalar_lea.vmem [#allocation2], %s514
        // Predicated region
        $region73: #{tpu_custom_call.1} parent=71 // pred_check
          %p516 = pneg %p56
        $region74: #{tpu_custom_call.1} parent=71 // pred_check_branch
          %518 = sbr.rel (%p516) target = $region76
        $region75: #{tpu_custom_call.1} parent=71 // pred_region
          %519 = dma.done %s512, 256
        $region76: #{tpu_custom_call.1} parent=71 // pred_fallthru
          _
        %s520 = sand.u32 %s35, 1
        %s521 = scalar_lea.sflag [#allocation6], %s520
        %s522 = sand.u32 %s69, 1
        %s523 = smul.addr %s522, 16
        %s524 = scalar_lea.vmem [#allocation5], %s523
        // Predicated region
        $region77: #{tpu_custom_call.1} parent=71 // pred_check
          %p525 = pneg %p82
        $region78: #{tpu_custom_call.1} parent=71 // pred_check_branch
          %527 = sbr.rel (%p525) target = $region80
        $region79: #{tpu_custom_call.1} parent=71 // pred_region
          %528 = dma.done %s521, 256
        $region80: #{tpu_custom_call.1} parent=71 // pred_fallthru
          _
        %s529 = sand.u32 %s35, 1
        %s530 = scalar_lea.sflag [#allocation6], %s529
        %s531 = sand.u32 %s95, 1
        %s532 = smul.addr %s531, 16
        %s533 = scalar_lea.vmem [#allocation7], %s532
        // Predicated region
        $region81: #{tpu_custom_call.1} parent=71 // pred_check
          %p534 = pneg %p108
        $region82: #{tpu_custom_call.1} parent=71 // pred_check_branch
          %536 = sbr.rel (%p534) target = $region84
        $region83: #{tpu_custom_call.1} parent=71 // pred_region
          %537 = dma.done %s530, 256
        $region84: #{tpu_custom_call.1} parent=71 // pred_fallthru
          _
        // Predicated region
        $region85: #{tpu_custom_call.1} parent=71 // pred_check
          %p538 = pneg %p155
        $region86: #{tpu_custom_call.1} parent=71 // pred_check_branch
          %540 = sbr.rel (%p538) target = $region88
        $region87: #{tpu_custom_call.1} parent=71 // pred_region
          %541 = dma.done [#allocation9], 256
        $region88: #{tpu_custom_call.1} parent=71 // pred_fallthru
          _
        // Predicated region
        $region89: #{tpu_custom_call.1} parent=71 // pred_check
          %p542 = pneg %p176
        $region90: #{tpu_custom_call.1} parent=71 // pred_check_branch
          %544 = sbr.rel (%p542) target = $region92
        $region91: #{tpu_custom_call.1} parent=71 // pred_region
          %545 = dma.done [#allocation9], 256
        $region92: #{tpu_custom_call.1} parent=71 // pred_fallthru
          _
        // Predicated region
        $region93: #{tpu_custom_call.1} parent=71 // pred_check
          %p546 = pneg %p197
        $region94: #{tpu_custom_call.1} parent=71 // pred_check_branch
          %548 = sbr.rel (%p546) target = $region96
        $region95: #{tpu_custom_call.1} parent=71 // pred_region
          %549 = dma.done [#allocation12], 256
        $region96: #{tpu_custom_call.1} parent=71 // pred_fallthru
          _
        // Predicated region
        $region97: #{tpu_custom_call.1} parent=71 // pred_check
          %p550 = pneg %p218
        $region98: #{tpu_custom_call.1} parent=71 // pred_check_branch
          %552 = sbr.rel (%p550) target = $region100
        $region99: #{tpu_custom_call.1} parent=71 // pred_region
          %553 = dma.done [#allocation12], 256
        $region100: #{tpu_custom_call.1} parent=71 // pred_fallthru
          _
        %s554 = sand.u32 %s43, 1
        %s555 = scalar_lea.sflag [#allocation3], %s554
        %s556 = sand.u32 %s43, 1
        %s557 = smul.addr %s556, 16
        %s558 = scalar_lea.vmem [#allocation2], %s557
        %p559 = pneg %p56
        %p560 = pneg %p53
        %s561 = sand.u32 %s35, 1
        %s562 = scalar_lea.sflag [#allocation6], %s561
        %s563 = sand.u32 %s69, 1
        %s564 = smul.addr %s563, 16
        %s565 = scalar_lea.vmem [#allocation5], %s564
        %p566 = pneg %p82
        %p567 = pneg %p79
        %s568 = sand.u32 %s35, 1
        %s569 = scalar_lea.sflag [#allocation6], %s568
        %s570 = sand.u32 %s95, 1
        %s571 = smul.addr %s570, 16
        %s572 = scalar_lea.vmem [#allocation7], %s571
        %p573 = pneg %p108
        %p574 = pneg %p105
        %p575 = scmp.lt.s32.totalorder %s35, 1
        %s576 = scalar_select %p575, %s35, 1
        %s577 = scalar_lea.vmem %s3, %s576
        %p578 = pneg %p134
        %p579 = pneg %p131
        %p580 = pneg %p155
        %p581 = pneg %p152
        %p582 = pneg %p176
        %p583 = pneg %p173
        %p584 = pneg %p197
        %p585 = pneg %p194
        %p586 = pneg %p218
        %p587 = pneg %p215
        %p588 = pneg %p239
        %p589 = pneg %p236
        %p590 = pneg %p260
        %p591 = pneg %p257
        %p592 = pneg %p281
        %p593 = pneg %p278
        %p594 = pneg %p302
        %p595 = pneg %p299
        %p596 = pneg %p323
        %p597 = pneg %p320
        %p598 = pneg %p349
        %p599 = pneg %p346
        %s600 = sand.u32 %s336, 1
        %s601 = scalar_lea.sflag [#allocation4], %s600
        %s602 = sand.u32 %s336, 1
        %s603 = smul.addr %s602, 16
        %s604 = scalar_lea.vmem [#allocation14], %s603
        %p605 = scmp.lt.s32.totalorder %s35, 1
        %s606 = scalar_select %p605, %s35, 1
        %s607 = scalar_lea.vmem %s3, %s606
        %v609 = vld [vmem:[%s9] sm:$0x1]
        %v610 = vld [vmem:[%s10] sm:$0x1]
        %v611 = vld [vmem:[%s11] sm:$0x1]
        %v612 = vld [vmem:[%s12] sm:$0x1]
        %v613 = vld [vmem:[%s8] sm:$0x1]
        %v614 = vld [vmem:[#allocation13] sm:$0xf]
        %v615 = vld [vmem:[#allocation13 + $0x4] sm:$0xf]
        %v616 = vld [vmem:[#allocation13 + $0x8] sm:$0xf]
        %v617 = vld [vmem:[#allocation13 + $0xc] sm:$0xf]
        %v618 = vld [vmem:[%s515] sm:$0xff]
        %v619 = vld [vmem:[%s515 + $0x8] sm:$0xff]
        %v620 = vld [vmem:[%s524] sm:$0xff]
        %v621 = vld [vmem:[%s524 + $0x8] sm:$0xff]
        %v622 = vld [vmem:[%s533] sm:$0xff]
        %v623 = vld [vmem:[%s533 + $0x8] sm:$0xff]
        %vm624 = vcmask 261120
        %v625 = vsel %vm624, %v618, 0.0
        %626 = vadd.xlane.f32.xlu0 %v625
        %v627 = vpop.xlane.xlu0 %626
        %v628 = vsel %vm624, %v619, 0.0
        %629 = vadd.xlane.f32.xlu0 %v628
        %v630 = vpop.xlane.xlu0 %629
        %v631 = vrcp.pop 32.0
        %v632 = vmul.f32 %v627, %v631
        %v633 = vmul.f32 %v630, %v631
        %v634 = vmul.f32 %v618, %v618
        %v635 = vmul.f32 %v619, %v619
        %v636 = vsel %vm624, %v634, 0.0
        %637 = vadd.xlane.f32.xlu0 %v636
        %v638 = vpop.xlane.xlu0 %637
        %v639 = vsel %vm624, %v635, 0.0
        %640 = vadd.xlane.f32.xlu0 %v639
        %v641 = vpop.xlane.xlu0 %640
        %v642 = vmul.f32 %v638, %v631
        %v643 = vmul.f32 %v641, %v631
        %v644 = vmul.f32 %v632, %v632
        %v645 = vmul.f32 %v633, %v633
        %v646 = vsub.f32 %v642, %v644
        %v647 = vsub.f32 %v643, %v645
        %v648 = vsub.f32 %v618, %v632
        %v649 = vsub.f32 %v619, %v633
        %v650 = vadd.f32 %v646, 1e-05
        %v651 = vadd.f32 %v647, 1e-05
        %v652 = vrsqrt.pop %v650
        %v653 = vrsqrt.pop %v651
        %v654 = vmul.f32 %v648, %v652
        %v655 = vmul.f32 %v649, %v653
        %v657 = vlaneseq
        %v658 = vshrl.u32 %v657, 7
        %v659 = vsub.s32 0, %v658
        %v660 = vrot.slane %v609, %v659
        %v662 = vmul.f32 %v654, %v660
        %v663 = vmul.f32 %v655, %v660
        %v665 = vlaneseq
        %v666 = vshrl.u32 %v665, 7
        %v667 = vsub.s32 0, %v666
        %v668 = vrot.slane %v610, %v667
        %v670 = vadd.f32 %v662, %v668
        %v671 = vadd.f32 %v663, %v668
        %v672 = vsel %vm624, %v620, 0.0
        %673 = vadd.xlane.f32.xlu0 %v672
        %v674 = vpop.xlane.xlu0 %673
        %v675 = vsel %vm624, %v621, 0.0
        %676 = vadd.xlane.f32.xlu0 %v675
        %v677 = vpop.xlane.xlu0 %676
        %v678 = vmul.f32 %v674, %v631
        %v679 = vmul.f32 %v677, %v631
        %v680 = vmul.f32 %v620, %v620
        %v681 = vmul.f32 %v621, %v621
        %v682 = vsel %vm624, %v680, 0.0
        %683 = vadd.xlane.f32.xlu0 %v682
        %v684 = vpop.xlane.xlu0 %683
        %v685 = vsel %vm624, %v681, 0.0
        %686 = vadd.xlane.f32.xlu0 %v685
        %v687 = vpop.xlane.xlu0 %686
        %v688 = vmul.f32 %v684, %v631
        %v689 = vmul.f32 %v687, %v631
        %v690 = vmul.f32 %v678, %v678
        %v691 = vmul.f32 %v679, %v679
        %v692 = vsub.f32 %v688, %v690
        %v693 = vsub.f32 %v689, %v691
        %v694 = vsub.f32 %v620, %v678
        %v695 = vsub.f32 %v621, %v679
        %v696 = vadd.f32 %v692, 1e-05
        %v697 = vadd.f32 %v693, 1e-05
        %v698 = vrsqrt.pop %v696
        %v699 = vrsqrt.pop %v697
        %v700 = vmul.f32 %v694, %v698
        %v701 = vmul.f32 %v695, %v699
        %v702 = vmul.f32 %v700, %v660
        %v703 = vmul.f32 %v701, %v660
        %v704 = vadd.f32 %v702, %v668
        %v705 = vadd.f32 %v703, %v668
        %v706 = vsel %vm624, %v622, 0.0
        %707 = vadd.xlane.f32.xlu0 %v706
        %v708 = vpop.xlane.xlu0 %707
        %v709 = vsel %vm624, %v623, 0.0
        %710 = vadd.xlane.f32.xlu0 %v709
        %v711 = vpop.xlane.xlu0 %710
        %v712 = vmul.f32 %v708, %v631
        %v713 = vmul.f32 %v711, %v631
        %v714 = vmul.f32 %v622, %v622
        %v715 = vmul.f32 %v623, %v623
        %v716 = vsel %vm624, %v714, 0.0
        %717 = vadd.xlane.f32.xlu0 %v716
        %v718 = vpop.xlane.xlu0 %717
        %v719 = vsel %vm624, %v715, 0.0
        %720 = vadd.xlane.f32.xlu0 %v719
        %v721 = vpop.xlane.xlu0 %720
        %v722 = vmul.f32 %v718, %v631
        %v723 = vmul.f32 %v721, %v631
        %v724 = vmul.f32 %v712, %v712
        %v725 = vmul.f32 %v713, %v713
        %v726 = vsub.f32 %v722, %v724
        %v727 = vsub.f32 %v723, %v725
        %v728 = vsub.f32 %v622, %v712
        %v729 = vsub.f32 %v623, %v713
        %v730 = vadd.f32 %v726, 1e-05
        %v731 = vadd.f32 %v727, 1e-05
        %v732 = vrsqrt.pop %v730
        %v733 = vrsqrt.pop %v731
        %v734 = vmul.f32 %v728, %v732
        %v735 = vmul.f32 %v729, %v733
        %v736 = vmul.f32 %v734, %v660
        %v737 = vmul.f32 %v735, %v660
        %v738 = vadd.f32 %v736, %v668
        %v739 = vadd.f32 %v737, %v668
        %v740 = vpack.c.bf16 %v671, %v670
        %v741 = vld [vmem:[#allocation8] sm:$0xf]
        %v742 = vld [vmem:[#allocation8 + $0x4] sm:$0xf]
        %v743 = vld [vmem:[#allocation8 + $0x8] sm:$0xf]
        %v744 = vld [vmem:[#allocation8 + $0xc] sm:$0xf]
        %v749 = vunpack.c.l.b16 %v741
        %v750 = vunpack.c.l.b16 %v742
        %v751 = vunpack.c.l.b16 %v743
        %v752 = vunpack.c.l.b16 %v744
        %v753 = vpack.c.b16 %v750, %v749
        %v754 = vpack.c.b16 %v752, %v751
        %v758 = vsel %vm624, %v740, 0
        %760 = vmatprep.subr.bf16.mxu0 0
        %761 = vmatpush1.bf16.msra.mxu0 0
        %762 = vmatprep.subr.bf16.mxu0 0
        %763 = vmatpush1.bf16.msra.mxu0 0
        %764 = vmatprep.subr.bf16.mxu0 0
        %765 = vmatpush1.bf16.msra.mxu0 0
        %766 = vmatprep.subr.bf16.mxu0 0
        %767 = vmatpush1.bf16.msra.mxu0 0
        %768 = vmatprep.subr.bf16.mxu0 0
        %769 = vmatpush1.bf16.msra.mxu0 0
        %770 = vmatprep.subr.bf16.mxu0 0
        %771 = vmatpush1.bf16.msra.mxu0 0
        %772 = vmatprep.subr.bf16.mxu0 0
        %773 = vmatpush1.bf16.msra.mxu0 %v754
        %774 = vmatprep.subr.bf16.mxu0 0
        %775 = vmatpush1.bf16.msra.mxu0 %v753
        %776 = vmatprep.subr.bf16.mxu0 0
        %777 = vmatpush2.bf16.msra.mxu0 0
        %778 = vmatprep.subr.bf16.mxu0 0
        %779 = vmatpush2.bf16.msra.mxu0 0
        %780 = vmatprep.subr.bf16.mxu0 0
        %781 = vmatpush2.bf16.msra.mxu0 0
        %782 = vmatprep.subr.bf16.mxu0 0
        %783 = vmatpush2.bf16.msra.mxu0 0
        %784 = vmatprep.subr.bf16.mxu0 0
        %785 = vmatpush2.bf16.msra.mxu0 0
        %786 = vmatprep.subr.bf16.mxu0 0
        %787 = vmatpush2.bf16.msra.mxu0 0
        %788 = vmatprep.subr.bf16.mxu0 0
        %789 = vmatpush2.bf16.msra.mxu0 0
        %790 = vmatprep.subr.bf16.mxu0 0
        %791 = vmatpush2.bf16.msra.mxu0 0
        %792 = vmatprep.mubr.bf16.mxu0 0
        %793 = vmatmul.mubr.bf16.gmra.mxu0 %v758
        %v794 = vpop.f32.mrf.mxu0
        %v795 = vadd.f32 0.0, %v794
        %v796 = vpop.f32.mrf.mxu0
        %v797 = vpop.f32.mrf.mxu0
        %v798 = vadd.f32 0.0, %v797
        %v799 = vpop.f32.mrf.mxu0
        %800 = vdwg.mxu0
        %v801 = vpack.c.bf16 %v705, %v704
        %v802 = vld [vmem:[#allocation10] sm:$0xf]
        %v803 = vld [vmem:[#allocation10 + $0x4] sm:$0xf]
        %v804 = vld [vmem:[#allocation10 + $0x8] sm:$0xf]
        %v805 = vld [vmem:[#allocation10 + $0xc] sm:$0xf]
        %v810 = vunpack.c.l.b16 %v802
        %v811 = vunpack.c.l.b16 %v803
        %v812 = vunpack.c.l.b16 %v804
        %v813 = vunpack.c.l.b16 %v805
        %v814 = vpack.c.b16 %v811, %v810
        %v815 = vpack.c.b16 %v813, %v812
        %v819 = vsel %vm624, %v801, 0
        %821 = vmatprep.subr.bf16.mxu0 0
        %822 = vmatpush1.bf16.msra.mxu0 0
        %823 = vmatprep.subr.bf16.mxu0 0
        %824 = vmatpush1.bf16.msra.mxu0 0
        %825 = vmatprep.subr.bf16.mxu0 0
        %826 = vmatpush1.bf16.msra.mxu0 0
        %827 = vmatprep.subr.bf16.mxu0 0
        %828 = vmatpush1.bf16.msra.mxu0 0
        %829 = vmatprep.subr.bf16.mxu0 0
        %830 = vmatpush1.bf16.msra.mxu0 0
        %831 = vmatprep.subr.bf16.mxu0 0
        %832 = vmatpush1.bf16.msra.mxu0 0
        %833 = vmatprep.subr.bf16.mxu0 0
        %834 = vmatpush1.bf16.msra.mxu0 %v815
        %835 = vmatprep.subr.bf16.mxu0 0
        %836 = vmatpush1.bf16.msra.mxu0 %v814
        %837 = vmatprep.subr.bf16.mxu0 0
        %838 = vmatpush2.bf16.msra.mxu0 0
        %839 = vmatprep.subr.bf16.mxu0 0
        %840 = vmatpush2.bf16.msra.mxu0 0
        %841 = vmatprep.subr.bf16.mxu0 0
        %842 = vmatpush2.bf16.msra.mxu0 0
        %843 = vmatprep.subr.bf16.mxu0 0
        %844 = vmatpush2.bf16.msra.mxu0 0
        %845 = vmatprep.subr.bf16.mxu0 0
        %846 = vmatpush2.bf16.msra.mxu0 0
        %847 = vmatprep.subr.bf16.mxu0 0
        %848 = vmatpush2.bf16.msra.mxu0 0
        %849 = vmatprep.subr.bf16.mxu0 0
        %850 = vmatpush2.bf16.msra.mxu0 0
        %851 = vmatprep.subr.bf16.mxu0 0
        %852 = vmatpush2.bf16.msra.mxu0 0
        %853 = vmatprep.mubr.bf16.mxu0 0
        %854 = vmatmul.mubr.bf16.gmra.mxu0 %v819
        %v855 = vpop.f32.mrf.mxu0
        %v856 = vadd.f32 0.0, %v855
        %v857 = vpop.f32.mrf.mxu0
        %v858 = vpop.f32.mrf.mxu0
        %v859 = vadd.f32 0.0, %v858
        %v860 = vpop.f32.mrf.mxu0
        %861 = vdwg.mxu0
        %v862 = vpack.c.bf16 %v739, %v738
        %v863 = vld [vmem:[#allocation11] sm:$0xf]
        %v864 = vld [vmem:[#allocation11 + $0x4] sm:$0xf]
        %v865 = vld [vmem:[#allocation11 + $0x8] sm:$0xf]
        %v866 = vld [vmem:[#allocation11 + $0xc] sm:$0xf]
        %v871 = vunpack.c.l.b16 %v863
        %v872 = vunpack.c.l.b16 %v864
        %v873 = vunpack.c.l.b16 %v865
        %v874 = vunpack.c.l.b16 %v866
        %v875 = vpack.c.b16 %v872, %v871
        %v876 = vpack.c.b16 %v874, %v873
        %v880 = vsel %vm624, %v862, 0
        %882 = vmatprep.subr.bf16.mxu0 0
        %883 = vmatpush1.bf16.msra.mxu0 0
        %884 = vmatprep.subr.bf16.mxu0 0
        %885 = vmatpush1.bf16.msra.mxu0 0
        %886 = vmatprep.subr.bf16.mxu0 0
        %887 = vmatpush1.bf16.msra.mxu0 0
        %888 = vmatprep.subr.bf16.mxu0 0
        %889 = vmatpush1.bf16.msra.mxu0 0
        %890 = vmatprep.subr.bf16.mxu0 0
        %891 = vmatpush1.bf16.msra.mxu0 0
        %892 = vmatprep.subr.bf16.mxu0 0
        %893 = vmatpush1.bf16.msra.mxu0 0
        %894 = vmatprep.subr.bf16.mxu0 0
        %895 = vmatpush1.bf16.msra.mxu0 %v876
        %896 = vmatprep.subr.bf16.mxu0 0
        %897 = vmatpush1.bf16.msra.mxu0 %v875
        %898 = vmatprep.subr.bf16.mxu0 0
        %899 = vmatpush2.bf16.msra.mxu0 0
        %900 = vmatprep.subr.bf16.mxu0 0
        %901 = vmatpush2.bf16.msra.mxu0 0
        %902 = vmatprep.subr.bf16.mxu0 0
        %903 = vmatpush2.bf16.msra.mxu0 0
        %904 = vmatprep.subr.bf16.mxu0 0
        %905 = vmatpush2.bf16.msra.mxu0 0
        %906 = vmatprep.subr.bf16.mxu0 0
        %907 = vmatpush2.bf16.msra.mxu0 0
        %908 = vmatprep.subr.bf16.mxu0 0
        %909 = vmatpush2.bf16.msra.mxu0 0
        %910 = vmatprep.subr.bf16.mxu0 0
        %911 = vmatpush2.bf16.msra.mxu0 0
        %912 = vmatprep.subr.bf16.mxu0 0
        %913 = vmatpush2.bf16.msra.mxu0 0
        %914 = vmatprep.mubr.bf16.mxu0 0
        %915 = vmatmul.mubr.bf16.gmra.mxu0 %v880
        %v916 = vpop.f32.mrf.mxu0
        %v917 = vadd.f32 0.0, %v916
        %v918 = vpop.f32.mrf.mxu0
        %v919 = vpop.f32.mrf.mxu0
        %v920 = vadd.f32 0.0, %v919
        %v921 = vpop.f32.mrf.mxu0
        %922 = vdwg.mxu0
        %v923 = vpack.c.bf16 %v798, %v795
        %v924 = vpack.c.bf16 %v859, %v856
        %v925 = vpack.c.bf16 %v920, %v917
        %v926 = vld [vmem:[%s607] sm:$0x1]
        %vm927 = vcmp.gt.f32.partialorder %v926, 0.0
        %v928 = vsel %vm927, 0.0, -1e+30
        %v930 = vlaneseq
        %v931 = vshrl.u32 %v930, 7
        %v932 = vsub.s32 0, %v931
        %v933 = vrot.slane %v928, %v932
        %vm935 = vcmask 64512
        %v937 = vsel %vm935, %v923, 0
        %v940 = vsel %vm935, %v924, 0
        %942 = vmatprep.subr.bf16.mxu0 0
        %943 = vmatpush1.bf16.xpose.msra.mxu0 0
        %944 = vmatprep.subr.bf16.mxu0 0
        %945 = vmatpush1.bf16.xpose.msra.mxu0 0
        %946 = vmatprep.subr.bf16.mxu0 0
        %947 = vmatpush1.bf16.xpose.msra.mxu0 0
        %948 = vmatprep.subr.bf16.mxu0 0
        %949 = vmatpush1.bf16.xpose.msra.mxu0 0
        %950 = vmatprep.subr.bf16.mxu0 0
        %951 = vmatpush1.bf16.xpose.msra.mxu0 0
        %952 = vmatprep.subr.bf16.mxu0 0
        %953 = vmatpush1.bf16.xpose.msra.mxu0 0
        %954 = vmatprep.subr.bf16.mxu0 0
        %955 = vmatpush1.bf16.xpose.msra.mxu0 0
        %956 = vmatprep.subr.bf16.mxu0 0
        %957 = vmatpush1.bf16.xpose.msra.mxu0 %v940
        %958 = vmatprep.subr.bf16.mxu0 0
        %959 = vmatpush2.bf16.xpose.msra.mxu0 0
        %960 = vmatprep.subr.bf16.mxu0 0
        %961 = vmatpush2.bf16.xpose.msra.mxu0 0
        %962 = vmatprep.subr.bf16.mxu0 0
        %963 = vmatpush2.bf16.xpose.msra.mxu0 0
        %964 = vmatprep.subr.bf16.mxu0 0
        %965 = vmatpush2.bf16.xpose.msra.mxu0 0
        %966 = vmatprep.subr.bf16.mxu0 0
        %967 = vmatpush2.bf16.xpose.msra.mxu0 0
        %968 = vmatprep.subr.bf16.mxu0 0
        %969 = vmatpush2.bf16.xpose.msra.mxu0 0
        %970 = vmatprep.subr.bf16.mxu0 0
        %971 = vmatpush2.bf16.xpose.msra.mxu0 0
        %972 = vmatprep.subr.bf16.mxu0 0
        %973 = vmatpush2.bf16.xpose.msra.mxu0 0
        %974 = vmatprep.mubr.bf16.mxu0 0
        %975 = vmatmul.mubr.bf16.gmra.mxu0 %v937
        %v976 = vpop.f32.mrf.mxu0
        %v977 = vadd.f32 %v933, %v976
        %v978 = vpop.f32.mrf.mxu0
        %v979 = vpop.f32.mrf.mxu0
        %v980 = vadd.f32 %v933, %v979
        %v981 = vpop.f32.mrf.mxu0
        %982 = vdwg.mxu0
        %vm983 = vcmask 130048
        %v984 = vsel %vm983, %v977, -inf
        %985 = vmax.xlane.f32.xlu0 %v984
        %v986 = vpop.xlane.xlu0 %985
        %v987 = vsel %vm983, %v980, -inf
        %988 = vmax.xlane.f32.xlu0 %v987
        %v989 = vpop.xlane.xlu0 %988
        %v990 = vsub.f32 %v977, %v986
        %v991 = vsub.f32 %v980, %v989
        %v992 = vmul.f32 %v990, 1.442695
        %v993 = vpow.pop %v992
        %v994 = vmul.f32 %v991, 1.442695
        %v995 = vpow.pop %v994
        %v996 = vsel %vm983, %v993, 0.0
        %997 = vadd.xlane.f32.xlu0 %v996
        %v998 = vpop.xlane.xlu0 %997
        %v999 = vsel %vm983, %v995, 0.0
        %1000 = vadd.xlane.f32.xlu0 %v999
        %v1001 = vpop.xlane.xlu0 %1000
        %v1002 = vpack.c.bf16 %v995, %v993
        %v1004 = vsel %vm983, %v1002, 0
        %1006 = vmatprep.subr.bf16.mxu0 0
        %1007 = vmatpush1.bf16.msra.mxu0 0
        %1008 = vmatprep.subr.bf16.mxu0 0
        %1009 = vmatpush1.bf16.msra.mxu0 0
        %1010 = vmatprep.subr.bf16.mxu0 0
        %1011 = vmatpush1.bf16.msra.mxu0 0
        %1012 = vmatprep.subr.bf16.mxu0 0
        %1013 = vmatpush1.bf16.msra.mxu0 0
        %1014 = vmatprep.subr.bf16.mxu0 0
        %1015 = vmatpush1.bf16.msra.mxu0 0
        %1016 = vmatprep.subr.bf16.mxu0 0
        %1017 = vmatpush1.bf16.msra.mxu0 0
        %1018 = vmatprep.subr.bf16.mxu0 0
        %1019 = vmatpush1.bf16.msra.mxu0 0
        %1020 = vmatprep.subr.bf16.mxu0 0
        %1021 = vmatpush1.bf16.msra.mxu0 %v925
        %1022 = vmatprep.subr.bf16.mxu0 0
        %1023 = vmatpush2.bf16.msra.mxu0 0
        %1024 = vmatprep.subr.bf16.mxu0 0
        %1025 = vmatpush2.bf16.msra.mxu0 0
        %1026 = vmatprep.subr.bf16.mxu0 0
        %1027 = vmatpush2.bf16.msra.mxu0 0
        %1028 = vmatprep.subr.bf16.mxu0 0
        %1029 = vmatpush2.bf16.msra.mxu0 0
        %1030 = vmatprep.subr.bf16.mxu0 0
        %1031 = vmatpush2.bf16.msra.mxu0 0
        %1032 = vmatprep.subr.bf16.mxu0 0
        %1033 = vmatpush2.bf16.msra.mxu0 0
        %1034 = vmatprep.subr.bf16.mxu0 0
        %1035 = vmatpush2.bf16.msra.mxu0 0
        %1036 = vmatprep.subr.bf16.mxu0 0
        %1037 = vmatpush2.bf16.msra.mxu0 0
        %1038 = vmatprep.mubr.bf16.mxu0 0
        %1039 = vmatmul.mubr.bf16.gmra.mxu0 %v1004
        %v1040 = vpop.f32.mrf.mxu0
        %v1041 = vadd.f32 0.0, %v1040
        %v1042 = vpop.f32.mrf.mxu0
        %v1043 = vpop.f32.mrf.mxu0
        %v1044 = vadd.f32 0.0, %v1043
        %v1045 = vpop.f32.mrf.mxu0
        %1046 = vdwg.mxu0
        %v1047 = vrcp.pop %v998
        %v1048 = vrcp.pop %v1001
        %v1049 = vmul.f32 %v1041, %v1047
        %v1050 = vmul.f32 %v1044, %v1048
        %1052 = vrot.lane.b32.xlu0 %v923, 120
        %v1053 = vpop.permute.xlu0 %1052
        %1055 = vrot.lane.b32.xlu0 %v924, 120
        %v1056 = vpop.permute.xlu0 %1055
        %v1058 = vsel %vm935, %v1053, 0
        %v1061 = vsel %vm935, %v1056, 0
        %1063 = vmatprep.subr.bf16.mxu0 0
        %1064 = vmatpush1.bf16.xpose.msra.mxu0 0
        %1065 = vmatprep.subr.bf16.mxu0 0
        %1066 = vmatpush1.bf16.xpose.msra.mxu0 0
        %1067 = vmatprep.subr.bf16.mxu0 0
        %1068 = vmatpush1.bf16.xpose.msra.mxu0 0
        %1069 = vmatprep.subr.bf16.mxu0 0
        %1070 = vmatpush1.bf16.xpose.msra.mxu0 0
        %1071 = vmatprep.subr.bf16.mxu0 0
        %1072 = vmatpush1.bf16.xpose.msra.mxu0 0
        %1073 = vmatprep.subr.bf16.mxu0 0
        %1074 = vmatpush1.bf16.xpose.msra.mxu0 0
        %1075 = vmatprep.subr.bf16.mxu0 0
        %1076 = vmatpush1.bf16.xpose.msra.mxu0 0
        %1077 = vmatprep.subr.bf16.mxu0 0
        %1078 = vmatpush1.bf16.xpose.msra.mxu0 %v1061
        %1079 = vmatprep.subr.bf16.mxu0 0
        %1080 = vmatpush2.bf16.xpose.msra.mxu0 0
        %1081 = vmatprep.subr.bf16.mxu0 0
        %1082 = vmatpush2.bf16.xpose.msra.mxu0 0
        %1083 = vmatprep.subr.bf16.mxu0 0
        %1084 = vmatpush2.bf16.xpose.msra.mxu0 0
        %1085 = vmatprep.subr.bf16.mxu0 0
        %1086 = vmatpush2.bf16.xpose.msra.mxu0 0
        %1087 = vmatprep.subr.bf16.mxu0 0
        %1088 = vmatpush2.bf16.xpose.msra.mxu0 0
        %1089 = vmatprep.subr.bf16.mxu0 0
        %1090 = vmatpush2.bf16.xpose.msra.mxu0 0
        %1091 = vmatprep.subr.bf16.mxu0 0
        %1092 = vmatpush2.bf16.xpose.msra.mxu0 0
        %1093 = vmatprep.subr.bf16.mxu0 0
        %1094 = vmatpush2.bf16.xpose.msra.mxu0 0
        %1095 = vmatprep.mubr.bf16.mxu0 0
        %1096 = vmatmul.mubr.bf16.gmra.mxu0 %v1058
        %v1097 = vpop.f32.mrf.mxu0
        %v1098 = vadd.f32 %v933, %v1097
        %v1099 = vpop.f32.mrf.mxu0
        %v1100 = vpop.f32.mrf.mxu0
        %v1101 = vadd.f32 %v933, %v1100
        %v1102 = vpop.f32.mrf.mxu0
        %1103 = vdwg.mxu0
        %v1104 = vsel %vm983, %v1098, -inf
        %1105 = vmax.xlane.f32.xlu0 %v1104
        %v1106 = vpop.xlane.xlu0 %1105
        %v1107 = vsel %vm983, %v1101, -inf
        %1108 = vmax.xlane.f32.xlu0 %v1107
        %v1109 = vpop.xlane.xlu0 %1108
        %v1110 = vsub.f32 %v1098, %v1106
        %v1111 = vsub.f32 %v1101, %v1109
        %v1112 = vmul.f32 %v1110, 1.442695
        %v1113 = vpow.pop %v1112
        %v1114 = vmul.f32 %v1111, 1.442695
        %v1115 = vpow.pop %v1114
        %v1116 = vsel %vm983, %v1113, 0.0
        %1117 = vadd.xlane.f32.xlu0 %v1116
        %v1118 = vpop.xlane.xlu0 %1117
        %v1119 = vsel %vm983, %v1115, 0.0
        %1120 = vadd.xlane.f32.xlu0 %v1119
        %v1121 = vpop.xlane.xlu0 %1120
        %v1122 = vpack.c.bf16 %v1115, %v1113
        %1124 = vrot.lane.b32.xlu0 %v925, 120
        %v1125 = vpop.permute.xlu0 %1124
        %v1128 = vsel %vm983, %v1122, 0
        %1130 = vmatprep.subr.bf16.mxu0 0
        %1131 = vmatpush1.bf16.msra.mxu0 0
        %1132 = vmatprep.subr.bf16.mxu0 0
        %1133 = vmatpush1.bf16.msra.mxu0 0
        %1134 = vmatprep.subr.bf16.mxu0 0
        %1135 = vmatpush1.bf16.msra.mxu0 0
        %1136 = vmatprep.subr.bf16.mxu0 0
        %1137 = vmatpush1.bf16.msra.mxu0 0
        %1138 = vmatprep.subr.bf16.mxu0 0
        %1139 = vmatpush1.bf16.msra.mxu0 0
        %1140 = vmatprep.subr.bf16.mxu0 0
        %1141 = vmatpush1.bf16.msra.mxu0 0
        %1142 = vmatprep.subr.bf16.mxu0 0
        %1143 = vmatpush1.bf16.msra.mxu0 0
        %1144 = vmatprep.subr.bf16.mxu0 0
        %1145 = vmatpush1.bf16.msra.mxu0 %v1125
        %1146 = vmatprep.subr.bf16.mxu0 0
        %1147 = vmatpush2.bf16.msra.mxu0 0
        %1148 = vmatprep.subr.bf16.mxu0 0
        %1149 = vmatpush2.bf16.msra.mxu0 0
        %1150 = vmatprep.subr.bf16.mxu0 0
        %1151 = vmatpush2.bf16.msra.mxu0 0
        %1152 = vmatprep.subr.bf16.mxu0 0
        %1153 = vmatpush2.bf16.msra.mxu0 0
        %1154 = vmatprep.subr.bf16.mxu0 0
        %1155 = vmatpush2.bf16.msra.mxu0 0
        %1156 = vmatprep.subr.bf16.mxu0 0
        %1157 = vmatpush2.bf16.msra.mxu0 0
        %1158 = vmatprep.subr.bf16.mxu0 0
        %1159 = vmatpush2.bf16.msra.mxu0 0
        %1160 = vmatprep.subr.bf16.mxu0 0
        %1161 = vmatpush2.bf16.msra.mxu0 0
        %1162 = vmatprep.mubr.bf16.mxu0 0
        %1163 = vmatmul.mubr.bf16.gmra.mxu0 %v1128
        %v1164 = vpop.f32.mrf.mxu0
        %v1165 = vadd.f32 0.0, %v1164
        %v1166 = vpop.f32.mrf.mxu0
        %v1167 = vpop.f32.mrf.mxu0
        %v1168 = vadd.f32 0.0, %v1167
        %v1169 = vpop.f32.mrf.mxu0
        %1170 = vdwg.mxu0
        %v1171 = vrcp.pop %v1118
        %v1172 = vrcp.pop %v1121
        %v1173 = vmul.f32 %v1165, %v1171
        %v1174 = vmul.f32 %v1168, %v1172
        %1175 = vrot.lane.b32.xlu0 %v923, 112
        %v1176 = vpop.permute.xlu0 %1175
        %1177 = vrot.lane.b32.xlu0 %v924, 112
        %v1178 = vpop.permute.xlu0 %1177
        %v1180 = vsel %vm935, %v1176, 0
        %v1183 = vsel %vm935, %v1178, 0
        %1185 = vmatprep.subr.bf16.mxu0 0
        %1186 = vmatpush1.bf16.xpose.msra.mxu0 0
        %1187 = vmatprep.subr.bf16.mxu0 0
        %1188 = vmatpush1.bf16.xpose.msra.mxu0 0
        %1189 = vmatprep.subr.bf16.mxu0 0
        %1190 = vmatpush1.bf16.xpose.msra.mxu0 0
        %1191 = vmatprep.subr.bf16.mxu0 0
        %1192 = vmatpush1.bf16.xpose.msra.mxu0 0
        %1193 = vmatprep.subr.bf16.mxu0 0
        %1194 = vmatpush1.bf16.xpose.msra.mxu0 0
        %1195 = vmatprep.subr.bf16.mxu0 0
        %1196 = vmatpush1.bf16.xpose.msra.mxu0 0
        %1197 = vmatprep.subr.bf16.mxu0 0
        %1198 = vmatpush1.bf16.xpose.msra.mxu0 0
        %1199 = vmatprep.subr.bf16.mxu0 0
        %1200 = vmatpush1.bf16.xpose.msra.mxu0 %v1183
        %1201 = vmatprep.subr.bf16.mxu0 0
        %1202 = vmatpush2.bf16.xpose.msra.mxu0 0
        %1203 = vmatprep.subr.bf16.mxu0 0
        %1204 = vmatpush2.bf16.xpose.msra.mxu0 0
        %1205 = vmatprep.subr.bf16.mxu0 0
        %1206 = vmatpush2.bf16.xpose.msra.mxu0 0
        %1207 = vmatprep.subr.bf16.mxu0 0
        %1208 = vmatpush2.bf16.xpose.msra.mxu0 0
        %1209 = vmatprep.subr.bf16.mxu0 0
        %1210 = vmatpush2.bf16.xpose.msra.mxu0 0
        %1211 = vmatprep.subr.bf16.mxu0 0
        %1212 = vmatpush2.bf16.xpose.msra.mxu0 0
        %1213 = vmatprep.subr.bf16.mxu0 0
        %1214 = vmatpush2.bf16.xpose.msra.mxu0 0
        %1215 = vmatprep.subr.bf16.mxu0 0
        %1216 = vmatpush2.bf16.xpose.msra.mxu0 0
        %1217 = vmatprep.mubr.bf16.mxu0 0
        %1218 = vmatmul.mubr.bf16.gmra.mxu0 %v1180
        %v1219 = vpop.f32.mrf.mxu0
        %v1220 = vadd.f32 %v933, %v1219
        %v1221 = vpop.f32.mrf.mxu0
        %v1222 = vpop.f32.mrf.mxu0
        %v1223 = vadd.f32 %v933, %v1222
        %v1224 = vpop.f32.mrf.mxu0
        %1225 = vdwg.mxu0
        %v1226 = vsel %vm983, %v1220, -inf
        %1227 = vmax.xlane.f32.xlu0 %v1226
        %v1228 = vpop.xlane.xlu0 %1227
        %v1229 = vsel %vm983, %v1223, -inf
        %1230 = vmax.xlane.f32.xlu0 %v1229
        %v1231 = vpop.xlane.xlu0 %1230
        %v1232 = vsub.f32 %v1220, %v1228
        %v1233 = vsub.f32 %v1223, %v1231
        %v1234 = vmul.f32 %v1232, 1.442695
        %v1235 = vpow.pop %v1234
        %v1236 = vmul.f32 %v1233, 1.442695
        %v1237 = vpow.pop %v1236
        %v1238 = vsel %vm983, %v1235, 0.0
        %1239 = vadd.xlane.f32.xlu0 %v1238
        %v1240 = vpop.xlane.xlu0 %1239
        %v1241 = vsel %vm983, %v1237, 0.0
        %1242 = vadd.xlane.f32.xlu0 %v1241
        %v1243 = vpop.xlane.xlu0 %1242
        %v1244 = vpack.c.bf16 %v1237, %v1235
        %1245 = vrot.lane.b32.xlu0 %v925, 112
        %v1246 = vpop.permute.xlu0 %1245
        %v1249 = vsel %vm983, %v1244, 0
        %1251 = vmatprep.subr.bf16.mxu0 0
        %1252 = vmatpush1.bf16.msra.mxu0 0
        %1253 = vmatprep.subr.bf16.mxu0 0
        %1254 = vmatpush1.bf16.msra.mxu0 0
        %1255 = vmatprep.subr.bf16.mxu0 0
        %1256 = vmatpush1.bf16.msra.mxu0 0
        %1257 = vmatprep.subr.bf16.mxu0 0
        %1258 = vmatpush1.bf16.msra.mxu0 0
        %1259 = vmatprep.subr.bf16.mxu0 0
        %1260 = vmatpush1.bf16.msra.mxu0 0
        %1261 = vmatprep.subr.bf16.mxu0 0
        %1262 = vmatpush1.bf16.msra.mxu0 0
        %1263 = vmatprep.subr.bf16.mxu0 0
        %1264 = vmatpush1.bf16.msra.mxu0 0
        %1265 = vmatprep.subr.bf16.mxu0 0
        %1266 = vmatpush1.bf16.msra.mxu0 %v1246
        %1267 = vmatprep.subr.bf16.mxu0 0
        %1268 = vmatpush2.bf16.msra.mxu0 0
        %1269 = vmatprep.subr.bf16.mxu0 0
        %1270 = vmatpush2.bf16.msra.mxu0 0
        %1271 = vmatprep.subr.bf16.mxu0 0
        %1272 = vmatpush2.bf16.msra.mxu0 0
        %1273 = vmatprep.subr.bf16.mxu0 0
        %1274 = vmatpush2.bf16.msra.mxu0 0
        %1275 = vmatprep.subr.bf16.mxu0 0
        %1276 = vmatpush2.bf16.msra.mxu0 0
        %1277 = vmatprep.subr.bf16.mxu0 0
        %1278 = vmatpush2.bf16.msra.mxu0 0
        %1279 = vmatprep.subr.bf16.mxu0 0
        %1280 = vmatpush2.bf16.msra.mxu0 0
        %1281 = vmatprep.subr.bf16.mxu0 0
        %1282 = vmatpush2.bf16.msra.mxu0 0
        %1283 = vmatprep.mubr.bf16.mxu0 0
        %1284 = vmatmul.mubr.bf16.gmra.mxu0 %v1249
        %v1285 = vpop.f32.mrf.mxu0
        %v1286 = vadd.f32 0.0, %v1285
        %v1287 = vpop.f32.mrf.mxu0
        %v1288 = vpop.f32.mrf.mxu0
        %v1289 = vadd.f32 0.0, %v1288
        %v1290 = vpop.f32.mrf.mxu0
        %1291 = vdwg.mxu0
        %v1292 = vrcp.pop %v1240
        %v1293 = vrcp.pop %v1243
        %v1294 = vmul.f32 %v1286, %v1292
        %v1295 = vmul.f32 %v1289, %v1293
        %1296 = vrot.lane.b32.xlu0 %v923, 104
        %v1297 = vpop.permute.xlu0 %1296
        %1298 = vrot.lane.b32.xlu0 %v924, 104
        %v1299 = vpop.permute.xlu0 %1298
        %v1301 = vsel %vm935, %v1297, 0
        %v1304 = vsel %vm935, %v1299, 0
        %1306 = vmatprep.subr.bf16.mxu0 0
        %1307 = vmatpush1.bf16.xpose.msra.mxu0 0
        %1308 = vmatprep.subr.bf16.mxu0 0
        %1309 = vmatpush1.bf16.xpose.msra.mxu0 0
        %1310 = vmatprep.subr.bf16.mxu0 0
        %1311 = vmatpush1.bf16.xpose.msra.mxu0 0
        %1312 = vmatprep.subr.bf16.mxu0 0
        %1313 = vmatpush1.bf16.xpose.msra.mxu0 0
        %1314 = vmatprep.subr.bf16.mxu0 0
        %1315 = vmatpush1.bf16.xpose.msra.mxu0 0
        %1316 = vmatprep.subr.bf16.mxu0 0
        %1317 = vmatpush1.bf16.xpose.msra.mxu0 0
        %1318 = vmatprep.subr.bf16.mxu0 0
        %1319 = vmatpush1.bf16.xpose.msra.mxu0 0
        %1320 = vmatprep.subr.bf16.mxu0 0
        %1321 = vmatpush1.bf16.xpose.msra.mxu0 %v1304
        %1322 = vmatprep.subr.bf16.mxu0 0
        %1323 = vmatpush2.bf16.xpose.msra.mxu0 0
        %1324 = vmatprep.subr.bf16.mxu0 0
        %1325 = vmatpush2.bf16.xpose.msra.mxu0 0
        %1326 = vmatprep.subr.bf16.mxu0 0
        %1327 = vmatpush2.bf16.xpose.msra.mxu0 0
        %1328 = vmatprep.subr.bf16.mxu0 0
        %1329 = vmatpush2.bf16.xpose.msra.mxu0 0
        %1330 = vmatprep.subr.bf16.mxu0 0
        %1331 = vmatpush2.bf16.xpose.msra.mxu0 0
        %1332 = vmatprep.subr.bf16.mxu0 0
        %1333 = vmatpush2.bf16.xpose.msra.mxu0 0
        %1334 = vmatprep.subr.bf16.mxu0 0
        %1335 = vmatpush2.bf16.xpose.msra.mxu0 0
        %1336 = vmatprep.subr.bf16.mxu0 0
        %1337 = vmatpush2.bf16.xpose.msra.mxu0 0
        %1338 = vmatprep.mubr.bf16.mxu0 0
        %1339 = vmatmul.mubr.bf16.gmra.mxu0 %v1301
        %v1340 = vpop.f32.mrf.mxu0
        %v1341 = vadd.f32 %v933, %v1340
        %v1342 = vpop.f32.mrf.mxu0
        %v1343 = vpop.f32.mrf.mxu0
        %v1344 = vadd.f32 %v933, %v1343
        %v1345 = vpop.f32.mrf.mxu0
        %1346 = vdwg.mxu0
        %v1347 = vsel %vm983, %v1341, -inf
        %1348 = vmax.xlane.f32.xlu0 %v1347
        %v1349 = vpop.xlane.xlu0 %1348
        %v1350 = vsel %vm983, %v1344, -inf
        %1351 = vmax.xlane.f32.xlu0 %v1350
        %v1352 = vpop.xlane.xlu0 %1351
        %v1353 = vsub.f32 %v1341, %v1349
        %v1354 = vsub.f32 %v1344, %v1352
        %v1355 = vmul.f32 %v1353, 1.442695
        %v1356 = vpow.pop %v1355
        %v1357 = vmul.f32 %v1354, 1.442695
        %v1358 = vpow.pop %v1357
        %v1359 = vsel %vm983, %v1356, 0.0
        %1360 = vadd.xlane.f32.xlu0 %v1359
        %v1361 = vpop.xlane.xlu0 %1360
        %v1362 = vsel %vm983, %v1358, 0.0
        %1363 = vadd.xlane.f32.xlu0 %v1362
        %v1364 = vpop.xlane.xlu0 %1363
        %v1365 = vpack.c.bf16 %v1358, %v1356
        %1366 = vrot.lane.b32.xlu0 %v925, 104
        %v1367 = vpop.permute.xlu0 %1366
        %v1370 = vsel %vm983, %v1365, 0
        %1372 = vmatprep.subr.bf16.mxu0 0
        %1373 = vmatpush1.bf16.msra.mxu0 0
        %1374 = vmatprep.subr.bf16.mxu0 0
        %1375 = vmatpush1.bf16.msra.mxu0 0
        %1376 = vmatprep.subr.bf16.mxu0 0
        %1377 = vmatpush1.bf16.msra.mxu0 0
        %1378 = vmatprep.subr.bf16.mxu0 0
        %1379 = vmatpush1.bf16.msra.mxu0 0
        %1380 = vmatprep.subr.bf16.mxu0 0
        %1381 = vmatpush1.bf16.msra.mxu0 0
        %1382 = vmatprep.subr.bf16.mxu0 0
        %1383 = vmatpush1.bf16.msra.mxu0 0
        %1384 = vmatprep.subr.bf16.mxu0 0
        %1385 = vmatpush1.bf16.msra.mxu0 0
        %1386 = vmatprep.subr.bf16.mxu0 0
        %1387 = vmatpush1.bf16.msra.mxu0 %v1367
        %1388 = vmatprep.subr.bf16.mxu0 0
        %1389 = vmatpush2.bf16.msra.mxu0 0
        %1390 = vmatprep.subr.bf16.mxu0 0
        %1391 = vmatpush2.bf16.msra.mxu0 0
        %1392 = vmatprep.subr.bf16.mxu0 0
        %1393 = vmatpush2.bf16.msra.mxu0 0
        %1394 = vmatprep.subr.bf16.mxu0 0
        %1395 = vmatpush2.bf16.msra.mxu0 0
        %1396 = vmatprep.subr.bf16.mxu0 0
        %1397 = vmatpush2.bf16.msra.mxu0 0
        %1398 = vmatprep.subr.bf16.mxu0 0
        %1399 = vmatpush2.bf16.msra.mxu0 0
        %1400 = vmatprep.subr.bf16.mxu0 0
        %1401 = vmatpush2.bf16.msra.mxu0 0
        %1402 = vmatprep.subr.bf16.mxu0 0
        %1403 = vmatpush2.bf16.msra.mxu0 0
        %1404 = vmatprep.mubr.bf16.mxu0 0
        %1405 = vmatmul.mubr.bf16.gmra.mxu0 %v1370
        %v1406 = vpop.f32.mrf.mxu0
        %v1407 = vadd.f32 0.0, %v1406
        %v1408 = vpop.f32.mrf.mxu0
        %v1409 = vpop.f32.mrf.mxu0
        %v1410 = vadd.f32 0.0, %v1409
        %v1411 = vpop.f32.mrf.mxu0
        %1412 = vdwg.mxu0
        %v1413 = vrcp.pop %v1361
        %v1414 = vrcp.pop %v1364
        %v1415 = vmul.f32 %v1407, %v1413
        %v1416 = vmul.f32 %v1410, %v1414
        %1419 = vrot.lane.b32.xlu0 %v1173, 8
        %v1420 = vpop.permute.xlu0 %1419
        %1421 = vrot.lane.b32.xlu0 %v1174, 8
        %v1422 = vpop.permute.xlu0 %1421
        %1427 = vrot.lane.b32.xlu0 %v1294, 16
        %v1428 = vpop.permute.xlu0 %1427
        %1429 = vrot.lane.b32.xlu0 %v1295, 16
        %v1430 = vpop.permute.xlu0 %1429
        %1435 = vrot.lane.b32.xlu0 %v1415, 24
        %v1436 = vpop.permute.xlu0 %1435
        %1437 = vrot.lane.b32.xlu0 %v1416, 24
        %v1438 = vpop.permute.xlu0 %1437
        %v1441 = vsel %vm935, %v1049, %v1420
        %v1442 = vsel %vm935, %v1050, %v1422
        %v1443 = vsel %vm983, %v1441, %v1428
        %v1444 = vsel %vm983, %v1442, %v1430
        %vm1445 = vcmask 195584
        %v1446 = vsel %vm1445, %v1443, %v1436
        %v1447 = vsel %vm1445, %v1444, %v1438
        %v1448 = vpack.c.bf16 %v1447, %v1446
        %v1450 = vlaneseq
        %v1451 = vshrl.u32 %v1450, 7
        %v1452 = vsub.s32 0, %v1451
        %v1453 = vrot.slane %v613, %v1452
        %v1459 = vunpack.c.l.b16 %v614
        %v1460 = vunpack.c.l.b16 %v615
        %v1461 = vunpack.c.l.b16 %v616
        %v1462 = vunpack.c.l.b16 %v617
        %v1463 = vpack.c.b16 %v1460, %v1459
        %v1464 = vpack.c.b16 %v1462, %v1461
        %v1468 = vsel %vm624, %v1448, 0
        %1470 = vmatprep.subr.bf16.mxu0 0
        %1471 = vmatpush1.bf16.msra.mxu0 0
        %1472 = vmatprep.subr.bf16.mxu0 0
        %1473 = vmatpush1.bf16.msra.mxu0 0
        %1474 = vmatprep.subr.bf16.mxu0 0
        %1475 = vmatpush1.bf16.msra.mxu0 0
        %1476 = vmatprep.subr.bf16.mxu0 0
        %1477 = vmatpush1.bf16.msra.mxu0 0
        %1478 = vmatprep.subr.bf16.mxu0 0
        %1479 = vmatpush1.bf16.msra.mxu0 0
        %1480 = vmatprep.subr.bf16.mxu0 0
        %1481 = vmatpush1.bf16.msra.mxu0 0
        %1482 = vmatprep.subr.bf16.mxu0 0
        %1483 = vmatpush1.bf16.msra.mxu0 %v1464
        %1484 = vmatprep.subr.bf16.mxu0 0
        %1485 = vmatpush1.bf16.msra.mxu0 %v1463
        %1486 = vmatprep.subr.bf16.mxu0 0
        %1487 = vmatpush2.bf16.msra.mxu0 0
        %1488 = vmatprep.subr.bf16.mxu0 0
        %1489 = vmatpush2.bf16.msra.mxu0 0
        %1490 = vmatprep.subr.bf16.mxu0 0
        %1491 = vmatpush2.bf16.msra.mxu0 0
        %1492 = vmatprep.subr.bf16.mxu0 0
        %1493 = vmatpush2.bf16.msra.mxu0 0
        %1494 = vmatprep.subr.bf16.mxu0 0
        %1495 = vmatpush2.bf16.msra.mxu0 0
        %1496 = vmatprep.subr.bf16.mxu0 0
        %1497 = vmatpush2.bf16.msra.mxu0 0
        %1498 = vmatprep.subr.bf16.mxu0 0
        %1499 = vmatpush2.bf16.msra.mxu0 0
        %1500 = vmatprep.subr.bf16.mxu0 0
        %1501 = vmatpush2.bf16.msra.mxu0 0
        %1502 = vmatprep.mubr.bf16.mxu0 0
        %1503 = vmatmul.mubr.bf16.gmra.mxu0 %v1468
        %v1504 = vpop.f32.mrf.mxu0
        %v1505 = vadd.f32 %v1453, %v1504
        %v1506 = vpop.f32.mrf.mxu0
        %v1507 = vpop.f32.mrf.mxu0
        %v1508 = vadd.f32 %v1453, %v1507
        %v1509 = vpop.f32.mrf.mxu0
        %1510 = vdwg.mxu0
        %v1511 = vadd.f32 %v1505, %v618
        %v1512 = vadd.f32 %v1508, %v619
        %v1513 = vsel %vm624, %v1511, 0.0
        %1514 = vadd.xlane.f32.xlu0 %v1513
        %v1515 = vpop.xlane.xlu0 %1514
        %v1516 = vsel %vm624, %v1512, 0.0
        %1517 = vadd.xlane.f32.xlu0 %v1516
        %v1518 = vpop.xlane.xlu0 %1517
        %v1519 = vmul.f32 %v1515, %v631
        %v1520 = vmul.f32 %v1518, %v631
        %v1521 = vmul.f32 %v1511, %v1511
        %v1522 = vmul.f32 %v1512, %v1512
        %v1523 = vsel %vm624, %v1521, 0.0
        %1524 = vadd.xlane.f32.xlu0 %v1523
        %v1525 = vpop.xlane.xlu0 %1524
        %v1526 = vsel %vm624, %v1522, 0.0
        %1527 = vadd.xlane.f32.xlu0 %v1526
        %v1528 = vpop.xlane.xlu0 %1527
        %v1529 = vmul.f32 %v1525, %v631
        %v1530 = vmul.f32 %v1528, %v631
        %v1531 = vmul.f32 %v1519, %v1519
        %v1532 = vmul.f32 %v1520, %v1520
        %v1533 = vsub.f32 %v1529, %v1531
        %v1534 = vsub.f32 %v1530, %v1532
        %v1535 = vsub.f32 %v1511, %v1519
        %v1536 = vsub.f32 %v1512, %v1520
        %v1537 = vadd.f32 %v1533, 1e-05
        %v1538 = vadd.f32 %v1534, 1e-05
        %v1539 = vrsqrt.pop %v1537
        %v1540 = vrsqrt.pop %v1538
        %v1541 = vmul.f32 %v1535, %v1539
        %v1542 = vmul.f32 %v1536, %v1540
        %v1544 = vlaneseq
        %v1545 = vshrl.u32 %v1544, 7
        %v1546 = vsub.s32 0, %v1545
        %v1547 = vrot.slane %v611, %v1546
        %v1549 = vmul.f32 %v1541, %v1547
        %v1550 = vmul.f32 %v1542, %v1547
        %v1552 = vlaneseq
        %v1553 = vshrl.u32 %v1552, 7
        %v1554 = vsub.s32 0, %v1553
        %v1555 = vrot.slane %v612, %v1554
        %v1557 = vadd.f32 %v1549, %v1555
        %v1558 = vadd.f32 %v1550, %v1555
        %1559 = vst.msk [vmem:[%s604] sm:$0xff] %vm624, %v1557
        %1560 = vst.msk [vmem:[%s604 + $0x8] sm:$0xff] %vm624, %v1558
        %s1561 = sand.u32 %s336, 1
        %s1562 = scalar_lea.sflag [#allocation4], %s1561
        %s1563 = sand.u32 %s336, 1
        %s1564 = smul.addr %s1563, 16
        %s1565 = scalar_lea.vmem [#allocation14], %s1564
        // Predicated region
        $region101: #{tpu_custom_call.1} parent=71 // pred_check
          %p1566 = pneg %p346
        $region102: #{tpu_custom_call.1} parent=71 // pred_check_branch
          %1568 = sbr.rel (%p1566) target = $region104
        $region103: #{tpu_custom_call.1} parent=71 // pred_region
          %s1570 = ssub.s32 256, 256
          %1571 = vsyncadd %s1562, %s1570
          %s1572 = smul.addr %s35, 2
          %s1573 = smul.addr %s1572, 128
          %s1574 = scalar_lea.hbm %s13, %s1573
          %s1575 = sshll.u32 %s1565, 4
          %s1576 = int_to_ptr.vmem [resolvable:$true] %s1575
          %1581 = dma.vmem_to_hbm [thread:$0]  %s1576, 256, %s1574, %s1562, 128, 128, 8
        $region104: #{tpu_custom_call.1} parent=71 // pred_fallthru
          _
      $region72: #{tpu_custom_call.1} parent=5 // pred_fallthru
        _
      %p1582 = scmp.le.s32.totalorder 2, %s30
      // Predicated region
      $region105: #{tpu_custom_call.1} parent=5 // pred_check
        %p1583 = pneg %p1582
      $region106: #{tpu_custom_call.1} parent=5 // pred_check_branch
        %1585 = sbr.rel (%p1583) target = $region108
      $region107: #{tpu_custom_call.1} parent=5 // pred_region
        %s1586 = ssub.s32 %s30, 2
        // Predicated region
        $region109: #{tpu_custom_call.1} parent=107 // pred_check
          %p1587 = pneg %p352
        $region110: #{tpu_custom_call.1} parent=107 // pred_check_branch
          %1589 = sbr.rel (%p1587) target = $region112
        $region111: #{tpu_custom_call.1} parent=107 // pred_region
          %s1590 = sand.u32 %s337, 1
          %s1591 = scalar_lea.sflag [#allocation4], %s1590
          %s1592 = sand.u32 %s337, 1
          %s1593 = smul.addr %s1592, 16
          %s1594 = scalar_lea.vmem [#allocation14], %s1593
          %1595 = dma.done %s1591, 256
        $region112: #{tpu_custom_call.1} parent=107 // pred_fallthru
          _
      $region108: #{tpu_custom_call.1} parent=5 // pred_fallthru
        _
    $region6: #{tpu_custom_call.1} parent=1 // loop_footer
      %s34 = sadd.s32 1, %s30
    $region7: #{tpu_custom_call.1} parent=1 // loop_footer_branch
      %29 = sbr.rel target = $region3
    $region8: #{tpu_custom_call.1} parent=1 // loop_exit
      _
    %1596 = vsyncpa [#allocation3], 1
    %s1597 = scalar_lea.sflag [#allocation3], 1
    %1598 = vsyncpa %s1597, 1
    %1599 = vsyncpa [#allocation6], 1
    %s1600 = scalar_lea.sflag [#allocation6], 1
    %1601 = vsyncpa %s1600, 1
    %1602 = vsyncpa [#allocation9], 1
    %1603 = vsyncpa [#allocation12], 1
    %1604 = vsyncpa [#allocation4], 1
    %s1605 = scalar_lea.sflag [#allocation4], 1
    %1606 = vsyncpa %s1605, 1

</llo_original>
